<compile_context>
chip_gen: v7x
topology: tpu7x:2x2x1
jax: 0.10.0
libtpu: 0.0.40
codegen_flags: <defaults>
</compile_context>

<pallas_src>
import jax
import jax.numpy as jnp
from jax.experimental import pallas as pl
from jax.experimental.pallas import tpu as pltpu

B = 2            # batch
C_IN = 70        # conv in channels
L_IN = 20        # input length -> conv out 18 -> pool out 9 (matches fc1 = 64*9)
C_OUT = 64       # conv out channels
K = 3            # conv kernel size
L_CONV = L_IN - K + 1        # 18
L_POOL = L_CONV // 2         # 9
HID = 64
NUM_CLASSES = 5

_VMEM = pl.BlockSpec(memory_space=pltpu.MemorySpace.VMEM)


def cnn1d_kernel(x_ref, w_ref, b_ref, out_ref):
    # x_ref : (L_IN, B, C_IN)              bf16  -- time on the leading (untiled) axis
    # w_ref : (K + L_POOL + 1, C_IN, 64)   bf16  -- rows 0..2 : conv taps (all 70 input chans)
    #                                               rows 3..11: fc1 per pooled step (first 64
    #                                                           input rows valid, rest zero)
    #                                               row  12   : fc2, zero-padded to 64 classes
    # b_ref : (3, 64) f32 -- row0 conv bias, row1 fc1 bias, row2 fc2 bias (zero-padded)
    b_all = b_ref[...]                       # single tiny load
    bc = b_all[0:1, :]                       # (1, 64)
    b1 = b_all[1:2, :]                       # (1, 64)
    b2 = b_all[2:3, :]                       # (1, 64), zero past NUM_CLASSES

    xb = x_ref[...]                          # (20, 2, 70) bf16, shared lhs for all 3 taps

    # Conv1d (valid, stride 1): 3 MXU matmuls sharing the same lhs; the tap shift is a free
    # leading-axis slice of each OUTPUT (no unaligned sublane slicing of x, no zero-init).
    acc = jnp.dot(xb, w_ref[0], preferred_element_type=jnp.float32)[0:L_CONV]
    acc = acc + jnp.dot(xb, w_ref[1], preferred_element_type=jnp.float32)[1:1 + L_CONV]
    acc = acc + jnp.dot(xb, w_ref[2], preferred_element_type=jnp.float32)[2:2 + L_CONV]
    acc = jnp.maximum(acc + bc, 0.0)                                 # (18, 2, 64) f32, VPU

    # MaxPool1d(2): split the leading time axis into (pair, within-pair) -- a free reshape
    # that leaves the tiled (B, C) dims untouched -- then one vectorized max.
    acc_pairs = acc.reshape(L_POOL, 2, B, C_OUT)                     # (9, 2, 2, 64)
    pooled = jnp.maximum(acc_pairs[:, 0], acc_pairs[:, 1])           # (9, 2, 64) f32
    pooled_bf = pooled.astype(jnp.bfloat16)                          # single tensor-wide cast

    # fc1 fused with the (channel-major) flatten: one batched contraction over channels with
    # the pooled-time index as the batch axis, then a cheap leading-axis reduction.
    w1 = w_ref[K:K + L_POOL, 0:C_OUT, :]                             # (9, 64, 64) bf16
    hp = jnp.einsum("pbc,pch->pbh", pooled_bf, w1,
                    preferred_element_type=jnp.float32)              # (9, 2, 64) f32
    h = hp[0]
    for p in range(1, L_POOL):                                       # 8 single-vreg f32 adds
        h = h + hp[p]
    h = jnp.maximum(h + b1, 0.0)                                     # fc1 bias + ReLU, (2, 64)

    # fc2 against zero-padded (64, 64) weights -> lane-dense (B, 64) store (sliced in wrapper).
    w2 = w_ref[K + L_POOL, 0:C_OUT, :]                               # (64, 64) bf16
    out_ref[...] = jnp.dot(h.astype(jnp.bfloat16), w2,
                           preferred_element_type=jnp.float32) + b2


def prepare_params(w_conv, b_conv, w_fc1, b_fc1, w_fc2, b_fc2):
    """One-time parameter preprocessing (off the per-call path).

    Packs all PyTorch-layout weights into a single kernel-layout bf16 buffer plus one packed
    f32 bias buffer (3 input DMAs per forward call instead of 5).
    """
    assert HID == C_OUT == 64, "weight/bias packing below assumes 64-wide rows"
    # conv weight (C_OUT, C_IN, K) -> (K, C_IN, C_OUT)
    wc = jnp.transpose(w_conv, (2, 1, 0)).astype(jnp.float32)
    # fc1 weight (HID, C_OUT*L_POOL) with PyTorch flatten order j = c*L_POOL + t
    # -> (L_POOL, C_OUT, HID) so the kernel contracts per pooled time step.
    w1 = jnp.transpose(w_fc1.reshape(HID, C_OUT, L_POOL), (2, 1, 0))
    # fc2 (NUM_CLASSES, HID) -> (HID, 64) with zero-padded columns -> lane-dense kernel store.
    w2 = jnp.zeros((HID, C_OUT), jnp.float32).at[:, :NUM_CLASSES].set(w_fc2.T)
    # Stack everything into one (K + L_POOL + 1, C_IN, C_OUT) buffer; the fc blocks are padded
    # with zero rows from C_OUT(64) up to C_IN(70) so all blocks share one shape.
    pad = ((0, 0), (0, C_IN - C_OUT), (0, 0))
    wbuf = jnp.concatenate(
        [wc, jnp.pad(w1, pad), jnp.pad(w2[None], pad)], axis=0).astype(jnp.bfloat16)
    # pack the three biases into a single (3, 64) f32 array (one DMA)
    biases = jnp.zeros((3, C_OUT), jnp.float32)
    biases = biases.at[0, :].set(b_conv)
    biases = biases.at[1, :].set(b_fc1)
    biases = biases.at[2, :NUM_CLASSES].set(b_fc2)
    return wbuf, biases


@jax.jit
def cnn1d_forward(x_ncl, wbuf, biases):
    """x_ncl: (B, 70, 20) in native PyTorch NCL layout; params come from prepare_params()."""
    # One tiny XLA fusion (2,800 elements): bf16 cast + transpose into the time-leading
    # (L_IN, B, C_IN) layout that keeps the entire kernel body free of sublane relayouts.
    x_lbc = jnp.transpose(x_ncl.astype(jnp.bfloat16), (2, 0, 1))
    out = pl.pallas_call(
        cnn1d_kernel,
        out_shape=jax.ShapeDtypeStruct((B, C_OUT), jnp.float32),
        in_specs=[_VMEM, _VMEM, _VMEM],
        out_specs=_VMEM,
    )(x_lbc, wbuf, biases)
    # Lane-dense (B, 64) kernel output; the class slice is a trivial XLA op (review item 6).
    return out[:, :NUM_CLASSES]


def reference_forward(x_ncl, w_conv, b_conv, w_fc1, b_fc1, w_fc2, b_fc2):
    """Plain-JAX f32 reference with PyTorch semantics (NCL conv, channel-major flatten)."""
    conv = jax.lax.conv_general_dilated(
        x_ncl, w_conv, window_strides=(1,), padding="VALID",
        dimension_numbers=("NCH", "OIH", "NCH"))
    conv = jax.nn.relu(conv + b_conv[None, :, None])              # (B, 64, 18)
    pooled = jnp.max(conv.reshape(B, C_OUT, L_POOL, 2), axis=-1)  # (B, 64, 9)
    flat = pooled.reshape(B, C_OUT * L_POOL)                      # channel-major flatten
    h = jax.nn.relu(flat @ w_fc1.T + b_fc1)
    return h @ w_fc2.T + b_fc2


if __name__ == "__main__":
    key = jax.random.PRNGKey(0)
    kx, k1, k2, k3, k4, k5, k6 = jax.random.split(key, 7)

    x = jax.random.normal(kx, (B, C_IN, L_IN), jnp.float32)

    # deterministic PyTorch-style uniform +/- 1/sqrt(fan_in) init, PyTorch layouts
    s_conv = 1.0 / (C_IN * K) ** 0.5
    w_conv = jax.random.uniform(k1, (C_OUT, C_IN, K), jnp.float32, -s_conv, s_conv)
    b_conv = jax.random.uniform(k2, (C_OUT,), jnp.float32, -s_conv, s_conv)
    s_fc1 = 1.0 / (C_OUT * L_POOL) ** 0.5
    w_fc1 = jax.random.uniform(k3, (HID, C_OUT * L_POOL), jnp.float32, -s_fc1, s_fc1)
    b_fc1 = jax.random.uniform(k4, (HID,), jnp.float32, -s_fc1, s_fc1)
    s_fc2 = 1.0 / HID ** 0.5
    w_fc2 = jax.random.uniform(k5, (NUM_CLASSES, HID), jnp.float32, -s_fc2, s_fc2)
    b_fc2 = jax.random.uniform(k6, (NUM_CLASSES,), jnp.float32, -s_fc2, s_fc2)

    # One-time parameter prep (off the per-call path).
    params = prepare_params(w_conv, b_conv, w_fc1, b_fc1, w_fc2, b_fc2)
    params = jax.tree_util.tree_map(jax.block_until_ready, params)

    out = cnn1d_forward(x, *params)
    out = jax.block_until_ready(out)

    ref = reference_forward(x, w_conv, b_conv, w_fc1, b_fc1, w_fc2, b_fc2)
    assert out.shape == (B, NUM_CLASSES)
    max_err = float(jnp.max(jnp.abs(out - ref)))
    # bf16 matmul operands (f32 MXU accumulation) -> relaxed tolerance vs. the f32 reference.
    assert max_err < 5e-2, f"mismatch vs reference: max abs err {max_err}"

    print("KERNEL_OK")
</pallas_src>

<mosaic_0001>
module attributes {stable_mosaic.version = 11 : i64} {
  func.func @cnn1d_kernel(%arg0: memref<20x2x70xbf16, #tpu.memory_space<vmem>>, %arg1: memref<13x70x64xbf16, #tpu.memory_space<vmem>>, %arg2: memref<3x64xf32, #tpu.memory_space<vmem>>, %arg3: memref<2x64xf32, #tpu.memory_space<vmem>>) attributes {dimension_semantics = [], scalar_prefetch = 0 : i64, scratch_operands = 0 : i64, tpu.core_type = #tpu.core_type<tc>} {
    %c0 = arith.constant 0 : index
    %c0_0 = arith.constant 0 : index
    %0 = vector.load %arg2[%c0, %c0_0] : memref<3x64xf32, #tpu.memory_space<vmem>>, vector<3x64xf32>
    %1 = vector.extract_strided_slice %0 {offsets = [0, 0], sizes = [1, 64], strides = [1, 1]} : vector<3x64xf32> to vector<1x64xf32>
    %2 = vector.extract_strided_slice %0 {offsets = [1, 0], sizes = [1, 64], strides = [1, 1]} : vector<3x64xf32> to vector<1x64xf32>
    %3 = vector.extract_strided_slice %0 {offsets = [2, 0], sizes = [1, 64], strides = [1, 1]} : vector<3x64xf32> to vector<1x64xf32>
    %c0_1 = arith.constant 0 : index
    %c0_2 = arith.constant 0 : index
    %c0_3 = arith.constant 0 : index
    %4 = vector.load %arg0[%c0_1, %c0_2, %c0_3] : memref<20x2x70xbf16, #tpu.memory_space<vmem>>, vector<20x2x70xbf16>
    %c0_4 = arith.constant 0 : index
    %c0_5 = arith.constant 0 : index
    %c0_6 = arith.constant 0 : index
    %5 = vector.load %arg1[%c0_4, %c0_5, %c0_6] : memref<13x70x64xbf16, #tpu.memory_space<vmem>>, vector<1x70x64xbf16>
    %6 = vector.shape_cast %5 : vector<1x70x64xbf16> to vector<70x64xbf16>
    %cst = arith.constant dense<0.000000e+00> : vector<20x2x64xf32>
    %7 = tpu.matmul %4, %6, %cst {dimension_numbers = #tpu.dot_dimension_numbers<[2], [0], [0, 1], [1], [0, 0, 0, 1, 1, 1], [], []>} : vector<20x2x70xbf16>, vector<70x64xbf16>, vector<20x2x64xf32> -> vector<20x2x64xf32>
    %8 = vector.extract_strided_slice %7 {offsets = [0, 0, 0], sizes = [18, 2, 64], strides = [1, 1, 1]} : vector<20x2x64xf32> to vector<18x2x64xf32>
    %c1 = arith.constant 1 : index
    %c0_7 = arith.constant 0 : index
    %c0_8 = arith.constant 0 : index
    %9 = vector.load %arg1[%c1, %c0_7, %c0_8] : memref<13x70x64xbf16, #tpu.memory_space<vmem>>, vector<1x70x64xbf16>
    %10 = vector.shape_cast %9 : vector<1x70x64xbf16> to vector<70x64xbf16>
    %cst_9 = arith.constant dense<0.000000e+00> : vector<20x2x64xf32>
    %11 = tpu.matmul %4, %10, %cst_9 {dimension_numbers = #tpu.dot_dimension_numbers<[2], [0], [0, 1], [1], [0, 0, 0, 1, 1, 1], [], []>} : vector<20x2x70xbf16>, vector<70x64xbf16>, vector<20x2x64xf32> -> vector<20x2x64xf32>
    %12 = vector.extract_strided_slice %11 {offsets = [1, 0, 0], sizes = [18, 2, 64], strides = [1, 1, 1]} : vector<20x2x64xf32> to vector<18x2x64xf32>
    %13 = arith.addf %8, %12 : vector<18x2x64xf32>
    %c2 = arith.constant 2 : index
    %c0_10 = arith.constant 0 : index
    %c0_11 = arith.constant 0 : index
    %14 = vector.load %arg1[%c2, %c0_10, %c0_11] : memref<13x70x64xbf16, #tpu.memory_space<vmem>>, vector<1x70x64xbf16>
    %15 = vector.shape_cast %14 : vector<1x70x64xbf16> to vector<70x64xbf16>
    %cst_12 = arith.constant dense<0.000000e+00> : vector<20x2x64xf32>
    %16 = tpu.matmul %4, %15, %cst_12 {dimension_numbers = #tpu.dot_dimension_numbers<[2], [0], [0, 1], [1], [0, 0, 0, 1, 1, 1], [], []>} : vector<20x2x70xbf16>, vector<70x64xbf16>, vector<20x2x64xf32> -> vector<20x2x64xf32>
    %17 = vector.extract_strided_slice %16 {offsets = [2, 0, 0], sizes = [18, 2, 64], strides = [1, 1, 1]} : vector<20x2x64xf32> to vector<18x2x64xf32>
    %18 = arith.addf %13, %17 : vector<18x2x64xf32>
    %19 = vector.shape_cast %1 : vector<1x64xf32> to vector<1x1x64xf32>
    %20 = vector.broadcast %19 : vector<1x1x64xf32> to vector<18x2x64xf32>
    %21 = arith.addf %18, %20 : vector<18x2x64xf32>
    %cst_13 = arith.constant 0.000000e+00 : f32
    %22 = vector.broadcast %cst_13 : f32 to vector<18x2x64xf32>
    %23 = arith.maximumf %21, %22 : vector<18x2x64xf32>
    %24 = vector.shape_cast %23 : vector<18x2x64xf32> to vector<9x2x2x64xf32>
    %25 = vector.extract_strided_slice %24 {offsets = [0, 0, 0, 0], sizes = [9, 1, 2, 64], strides = [1, 1, 1, 1]} : vector<9x2x2x64xf32> to vector<9x1x2x64xf32>
    %26 = vector.shape_cast %25 : vector<9x1x2x64xf32> to vector<9x2x64xf32>
    %27 = vector.extract_strided_slice %24 {offsets = [0, 1, 0, 0], sizes = [9, 1, 2, 64], strides = [1, 1, 1, 1]} : vector<9x2x2x64xf32> to vector<9x1x2x64xf32>
    %28 = vector.shape_cast %27 : vector<9x1x2x64xf32> to vector<9x2x64xf32>
    %29 = arith.maximumf %26, %28 : vector<9x2x64xf32>
    %30 = arith.truncf %29 : vector<9x2x64xf32> to vector<9x2x64xbf16>
    %c3 = arith.constant 3 : index
    %c0_14 = arith.constant 0 : index
    %c0_15 = arith.constant 0 : index
    %31 = vector.load %arg1[%c3, %c0_14, %c0_15] : memref<13x70x64xbf16, #tpu.memory_space<vmem>>, vector<9x64x64xbf16>
    "tpu.trace_start"() <{level = 10 : i32, message = "pbc,pch->pbh"}> : () -> ()
    %cst_16 = arith.constant dense<0.000000e+00> : vector<9x2x64xf32>
    %32 = tpu.matmul %30, %31, %cst_16 {dimension_numbers = #tpu.dot_dimension_numbers<[2], [1], [1], [2], [0, 0, 0, 1, 1, 2], [0], [0]>} : vector<9x2x64xbf16>, vector<9x64x64xbf16>, vector<9x2x64xf32> -> vector<9x2x64xf32>
    "tpu.trace_stop"() : () -> ()
    %33 = vector.extract_strided_slice %32 {offsets = [0, 0, 0], sizes = [1, 2, 64], strides = [1, 1, 1]} : vector<9x2x64xf32> to vector<1x2x64xf32>
    %34 = vector.shape_cast %33 : vector<1x2x64xf32> to vector<2x64xf32>
    %35 = vector.extract_strided_slice %32 {offsets = [1, 0, 0], sizes = [1, 2, 64], strides = [1, 1, 1]} : vector<9x2x64xf32> to vector<1x2x64xf32>
    %36 = vector.shape_cast %35 : vector<1x2x64xf32> to vector<2x64xf32>
    %37 = arith.addf %34, %36 : vector<2x64xf32>
    %38 = vector.extract_strided_slice %32 {offsets = [2, 0, 0], sizes = [1, 2, 64], strides = [1, 1, 1]} : vector<9x2x64xf32> to vector<1x2x64xf32>
    %39 = vector.shape_cast %38 : vector<1x2x64xf32> to vector<2x64xf32>
    %40 = arith.addf %37, %39 : vector<2x64xf32>
    %41 = vector.extract_strided_slice %32 {offsets = [3, 0, 0], sizes = [1, 2, 64], strides = [1, 1, 1]} : vector<9x2x64xf32> to vector<1x2x64xf32>
    %42 = vector.shape_cast %41 : vector<1x2x64xf32> to vector<2x64xf32>
    %43 = arith.addf %40, %42 : vector<2x64xf32>
    %44 = vector.extract_strided_slice %32 {offsets = [4, 0, 0], sizes = [1, 2, 64], strides = [1, 1, 1]} : vector<9x2x64xf32> to vector<1x2x64xf32>
    %45 = vector.shape_cast %44 : vector<1x2x64xf32> to vector<2x64xf32>
    %46 = arith.addf %43, %45 : vector<2x64xf32>
    %47 = vector.extract_strided_slice %32 {offsets = [5, 0, 0], sizes = [1, 2, 64], strides = [1, 1, 1]} : vector<9x2x64xf32> to vector<1x2x64xf32>
    %48 = vector.shape_cast %47 : vector<1x2x64xf32> to vector<2x64xf32>
    %49 = arith.addf %46, %48 : vector<2x64xf32>
    %50 = vector.extract_strided_slice %32 {offsets = [6, 0, 0], sizes = [1, 2, 64], strides = [1, 1, 1]} : vector<9x2x64xf32> to vector<1x2x64xf32>
    %51 = vector.shape_cast %50 : vector<1x2x64xf32> to vector<2x64xf32>
    %52 = arith.addf %49, %51 : vector<2x64xf32>
    %53 = vector.extract_strided_slice %32 {offsets = [7, 0, 0], sizes = [1, 2, 64], strides = [1, 1, 1]} : vector<9x2x64xf32> to vector<1x2x64xf32>
    %54 = vector.shape_cast %53 : vector<1x2x64xf32> to vector<2x64xf32>
    %55 = arith.addf %52, %54 : vector<2x64xf32>
    %56 = vector.extract_strided_slice %32 {offsets = [8, 0, 0], sizes = [1, 2, 64], strides = [1, 1, 1]} : vector<9x2x64xf32> to vector<1x2x64xf32>
    %57 = vector.shape_cast %56 : vector<1x2x64xf32> to vector<2x64xf32>
    %58 = arith.addf %55, %57 : vector<2x64xf32>
    %59 = vector.broadcast %2 : vector<1x64xf32> to vector<2x64xf32>
    %60 = arith.addf %58, %59 : vector<2x64xf32>
    %cst_17 = arith.constant 0.000000e+00 : f32
    %61 = vector.broadcast %cst_17 : f32 to vector<2x64xf32>
    %62 = arith.maximumf %60, %61 : vector<2x64xf32>
    %c12 = arith.constant 12 : index
    %c0_18 = arith.constant 0 : index
    %c0_19 = arith.constant 0 : index
    %63 = vector.load %arg1[%c12, %c0_18, %c0_19] : memref<13x70x64xbf16, #tpu.memory_space<vmem>>, vector<1x64x64xbf16>
    %64 = vector.shape_cast %63 : vector<1x64x64xbf16> to vector<64x64xbf16>
    %65 = arith.truncf %62 : vector<2x64xf32> to vector<2x64xbf16>
    %cst_20 = arith.constant dense<0.000000e+00> : vector<2x64xf32>
    %66 = tpu.matmul %65, %64, %cst_20 {dimension_numbers = #tpu.dot_dimension_numbers<[1], [0], [0], [1], [0, 0, 1, 1], [], []>} : vector<2x64xbf16>, vector<64x64xbf16>, vector<2x64xf32> -> vector<2x64xf32>
    %67 = vector.broadcast %3 : vector<1x64xf32> to vector<2x64xf32>
    %68 = arith.addf %66, %67 : vector<2x64xf32>
    %c0_21 = arith.constant 0 : index
    %c0_22 = arith.constant 0 : index
    %69 = vector.load %arg3[%c0_21, %c0_22] : memref<2x64xf32, #tpu.memory_space<vmem>>, vector<2x64xf32>
    tpu.vector_store %arg3[%c0_21, %c0_22], %68 {strides = array<i32>} : memref<2x64xf32, #tpu.memory_space<vmem>>, vector<2x64xf32>,
    return
  }
}

</mosaic_0001>

<llo_original>
// kernel: cnn1d_forward.1
$region0: #{cnn1d_forward.1}
  #allocation0 [shape = 'u32[]', space=smem, size = 0x4, offset = 0x4, fixed_abs, tag = 'smem constant byte address 0x4 - core index']
  #allocation1 [shape = 'u32[144,128]{1,0:T(1,128)}', space=vmem, size = 0x12000, scoped, tag = 'internal scratch']
  %s0 = inlined_call_operand.vmem [shape: bf16[20,2,70], index: 0, kind: input, shape index: {}]
  %s1 = inlined_call_operand.vmem [shape: bf16[13,70,64], index: 1, kind: input, shape index: {}]
  %s2 = inlined_call_operand.vmem [shape: f32[3,64], index: 2, kind: input, shape index: {}]
  %s3 = inlined_call_operand.hbm [shape: f32[2,64], index: 3, kind: output, shape index: {}]
  %s4 = sld [smem:[#allocation0]]
  $region22: #{cnn1d_forward.1} parent=0
    _
  %s6 = ssub.s32 1, %s4
  %s7 = scalar_select 0, %s6, %s4
  $region1: #{cnn1d_forward.1} parent=0
    #allocation2 [shape = 'u8[1024]{0}', space=vmem, size = 0x400, scoped, tag = 'output window, operand 0, single buffered']
    #allocation3 [shape = 's32[1]{0}', space=sflag, size = 0x4, scoped, tag = 'scoped memory for cnn1d_forward.1']
    %8 = vsyncpa [#allocation3], 0
    // Predicated region
    $region2: #{cnn1d_forward.1} parent=1 // pred_check
      _
    $region3: #{cnn1d_forward.1} parent=1 // pred_check_branch
      %10 = sbr.rel (0) target = $region5
    $region4: #{cnn1d_forward.1} parent=1 // pred_region
      _
    $region5: #{cnn1d_forward.1} parent=1 // pred_fallthru
      _
    // Predicated region
    $region6: #{cnn1d_forward.1} parent=1 // pred_check
      _
    $region7: #{cnn1d_forward.1} parent=1 // pred_check_branch
      %12 = sbr.rel (0) target = $region9
    $region8: #{cnn1d_forward.1} parent=1 // pred_region
      _
    $region9: #{cnn1d_forward.1} parent=1 // pred_fallthru
      _
    // Predicated region
    $region10: #{cnn1d_forward.1} parent=1 // pred_check
      _
    $region11: #{cnn1d_forward.1} parent=1 // pred_check_branch
      %14 = sbr.rel (0) target = $region13
    $region12: #{cnn1d_forward.1} parent=1 // pred_region
      _
    $region13: #{cnn1d_forward.1} parent=1 // pred_fallthru
      _
    %v16 = vld [vmem:[%s2] sm:$0x7]
    %v17 = vld [vmem:[%s0] sm:$0x1]
    %v18 = vld [vmem:[%s0 + $0x1] sm:$0x1]
    %v19 = vld [vmem:[%s0 + $0x2] sm:$0x1]
    %v20 = vld [vmem:[%s0 + $0x3] sm:$0x1]
    %v21 = vld [vmem:[%s0 + $0x4] sm:$0x1]
    %v22 = vld [vmem:[%s0 + $0x5] sm:$0x1]
    %v23 = vld [vmem:[%s0 + $0x6] sm:$0x1]
    %v24 = vld [vmem:[%s0 + $0x7] sm:$0x1]
    %v25 = vld [vmem:[%s0 + $0x8] sm:$0x1]
    %v26 = vld [vmem:[%s0 + $0x9] sm:$0x1]
    %v27 = vld [vmem:[%s0 + $0xa] sm:$0x1]
    %v28 = vld [vmem:[%s0 + $0xb] sm:$0x1]
    %v29 = vld [vmem:[%s0 + $0xc] sm:$0x1]
    %v30 = vld [vmem:[%s0 + $0xd] sm:$0x1]
    %v31 = vld [vmem:[%s0 + $0xe] sm:$0x1]
    %v32 = vld [vmem:[%s0 + $0xf] sm:$0x1]
    %v33 = vld [vmem:[%s0 + $0x10] sm:$0x1]
    %v34 = vld [vmem:[%s0 + $0x11] sm:$0x1]
    %v35 = vld [vmem:[%s0 + $0x12] sm:$0x1]
    %v36 = vld [vmem:[%s0 + $0x13] sm:$0x1]
    %v37 = vld [vmem:[%s1] sm:$0xf]
    %v38 = vld [vmem:[%s1 + $0x4] sm:$0xf]
    %v39 = vld [vmem:[%s1 + $0x8] sm:$0xf]
    %v40 = vld [vmem:[%s1 + $0xc] sm:$0xf]
    %v41 = vld [vmem:[%s1 + $0x10] sm:$0xf]
    %v42 = vld [vmem:[%s1 + $0x14] sm:$0xf]
    %v43 = vld [vmem:[%s1 + $0x18] sm:$0xf]
    %v44 = vld [vmem:[%s1 + $0x1c] sm:$0xf]
    %v45 = vld [vmem:[%s1 + $0x20] sm:$0x7]
    %v66 = vcombine.low %v17, %v18
    %v67 = vcombine.low %v19, %v20
    %v68 = vcombine.low %v21, %v22
    %v69 = vcombine.low %v23, %v24
    %v71 = vunpack.c.l.s4 1966171168
    %v72 = vunpack.c.0.s8 %v71
    %v73 = vlaneseq
    %v74 = vshrl.u32 %v73, 7
    %v75 = vsub.s32 %v72, %v74
    %v76 = vrot.slane %v66, %v75
    %v78 = vunpack.c.l.s4 1966171168
    %v79 = vunpack.c.0.s8 %v78
    %v80 = vlaneseq
    %v81 = vshrl.u32 %v80, 7
    %v82 = vsub.s32 %v79, %v81
    %v83 = vrot.slane %v67, %v82
    %v85 = vunpack.c.l.s4 1966171168
    %v86 = vunpack.c.0.s8 %v85
    %v87 = vlaneseq
    %v88 = vshrl.u32 %v87, 7
    %v89 = vsub.s32 %v86, %v88
    %v90 = vrot.slane %v68, %v89
    %v92 = vunpack.c.l.s4 1966171168
    %v93 = vunpack.c.0.s8 %v92
    %v94 = vlaneseq
    %v95 = vshrl.u32 %v94, 7
    %v96 = vsub.s32 %v93, %v95
    %v97 = vrot.slane %v69, %v96
    %v98 = vcombine.low %v76, %v83
    %v99 = vcombine.low %v90, %v97
    %v101 = vunpack.c.l.s4 1966171168
    %v102 = vunpack.c.0.s8 %v101
    %v103 = vlaneseq
    %v104 = vshrl.u32 %v103, 7
    %v105 = vsub.s32 %v102, %v104
    %v106 = vrot.slane %v98, %v105
    %v108 = vunpack.c.l.s4 1966171168
    %v109 = vunpack.c.0.s8 %v108
    %v110 = vlaneseq
    %v111 = vshrl.u32 %v110, 7
    %v112 = vsub.s32 %v109, %v111
    %v113 = vrot.slane %v99, %v112
    %v114 = vcombine.low %v106, %v113
    %v115 = vcombine.low %v25, %v26
    %v116 = vcombine.low %v27, %v28
    %v117 = vcombine.low %v29, %v30
    %v118 = vcombine.low %v31, %v32
    %v120 = vunpack.c.l.s4 1966171168
    %v121 = vunpack.c.0.s8 %v120
    %v122 = vlaneseq
    %v123 = vshrl.u32 %v122, 7
    %v124 = vsub.s32 %v121, %v123
    %v125 = vrot.slane %v115, %v124
    %v127 = vunpack.c.l.s4 1966171168
    %v128 = vunpack.c.0.s8 %v127
    %v129 = vlaneseq
    %v130 = vshrl.u32 %v129, 7
    %v131 = vsub.s32 %v128, %v130
    %v132 = vrot.slane %v116, %v131
    %v134 = vunpack.c.l.s4 1966171168
    %v135 = vunpack.c.0.s8 %v134
    %v136 = vlaneseq
    %v137 = vshrl.u32 %v136, 7
    %v138 = vsub.s32 %v135, %v137
    %v139 = vrot.slane %v117, %v138
    %v141 = vunpack.c.l.s4 1966171168
    %v142 = vunpack.c.0.s8 %v141
    %v143 = vlaneseq
    %v144 = vshrl.u32 %v143, 7
    %v145 = vsub.s32 %v142, %v144
    %v146 = vrot.slane %v118, %v145
    %v147 = vcombine.low %v125, %v132
    %v148 = vcombine.low %v139, %v146
    %v150 = vunpack.c.l.s4 1966171168
    %v151 = vunpack.c.0.s8 %v150
    %v152 = vlaneseq
    %v153 = vshrl.u32 %v152, 7
    %v154 = vsub.s32 %v151, %v153
    %v155 = vrot.slane %v147, %v154
    %v157 = vunpack.c.l.s4 1966171168
    %v158 = vunpack.c.0.s8 %v157
    %v159 = vlaneseq
    %v160 = vshrl.u32 %v159, 7
    %v161 = vsub.s32 %v158, %v160
    %v162 = vrot.slane %v148, %v161
    %v163 = vcombine.low %v155, %v162
    %v164 = vcombine.low %v33, %v34
    %v165 = vcombine.low %v35, %v36
    %v167 = vunpack.c.l.s4 1966171168
    %v168 = vunpack.c.0.s8 %v167
    %v169 = vlaneseq
    %v170 = vshrl.u32 %v169, 7
    %v171 = vsub.s32 %v168, %v170
    %v172 = vrot.slane %v164, %v171
    %v174 = vunpack.c.l.s4 1966171168
    %v175 = vunpack.c.0.s8 %v174
    %v176 = vlaneseq
    %v177 = vshrl.u32 %v176, 7
    %v178 = vsub.s32 %v175, %v177
    %v179 = vrot.slane %v165, %v178
    %v180 = vcombine.low %v172, %v179
    %v182 = vunpack.c.l.s4 1966171168
    %v183 = vunpack.c.0.s8 %v182
    %v184 = vlaneseq
    %v185 = vshrl.u32 %v184, 7
    %v186 = vsub.s32 %v183, %v185
    %v187 = vrot.slane %v180, %v186
    %v197 = vunpack.c.l.b16 %v37
    %v198 = vunpack.c.l.b16 %v38
    %v199 = vunpack.c.l.b16 %v39
    %v200 = vunpack.c.l.b16 %v40
    %v201 = vunpack.c.l.b16 %v41
    %v202 = vunpack.c.l.b16 %v42
    %v203 = vunpack.c.l.b16 %v43
    %v204 = vunpack.c.l.b16 %v44
    %v205 = vunpack.c.l.b16 %v45
    %v206 = vpack.c.b16 %v198, %v197
    %v207 = vpack.c.b16 %v200, %v199
    %v208 = vpack.c.b16 %v202, %v201
    %v209 = vpack.c.b16 %v204, %v203
    %v210 = vpack.c.b16 %v205, %v205
    %vm215 = vcmask 572416
    %v217 = vsel %vm215, %v114, 0
    %v220 = vsel %vm215, %v163, 0
    %v223 = vsel %vm215, %v187, 0
    %vm225 = vcmask 1042432
    %v227 = vsel %vm225, %v210, 0
    %229 = vmatprep.subr.bf16.mxu0 0
    %230 = vmatpush1.bf16.msra.mxu0 %v206
    %231 = vmatprep.subr.bf16.mxu0 0
    %232 = vmatpush1.bf16.msra.mxu0 %v207
    %233 = vmatprep.subr.bf16.mxu0 0
    %234 = vmatpush1.bf16.msra.mxu0 %v208
    %235 = vmatprep.subr.bf16.mxu0 0
    %236 = vmatpush1.bf16.msra.mxu0 %v209
    %237 = vmatprep.subr.bf16.mxu0 0
    %238 = vmatpush1.bf16.msra.mxu0 %v227
    %239 = vmatprep.subr.bf16.mxu0 0
    %240 = vmatpush1.bf16.msra.mxu0 0
    %241 = vmatprep.subr.bf16.mxu0 0
    %242 = vmatpush1.bf16.msra.mxu0 0
    %243 = vmatprep.subr.bf16.mxu0 0
    %244 = vmatpush1.bf16.msra.mxu0 0
    %245 = vmatprep.subr.bf16.mxu0 0
    %246 = vmatpush1.bf16.msra.mxu0 0
    %247 = vmatprep.subr.bf16.mxu0 0
    %248 = vmatpush1.bf16.msra.mxu0 0
    %249 = vmatprep.subr.bf16.mxu0 0
    %250 = vmatpush1.bf16.msra.mxu0 0
    %251 = vmatprep.subr.bf16.mxu0 0
    %252 = vmatpush1.bf16.msra.mxu0 0
    %253 = vmatprep.subr.bf16.mxu0 0
    %254 = vmatpush1.bf16.msra.mxu0 0
    %255 = vmatprep.subr.bf16.mxu0 0
    %256 = vmatpush1.bf16.msra.mxu0 0
    %257 = vmatprep.subr.bf16.mxu0 0
    %258 = vmatpush1.bf16.msra.mxu0 0
    %259 = vmatprep.subr.bf16.mxu0 0
    %260 = vmatpush1.bf16.msra.mxu0 0
    %261 = vmatprep.mubr.bf16.mxu0 0
    %262 = vmatmul.mubr.bf16.gmra.mrb[0].mxu0 %v217
    %v263 = vpop.f32.mrb[0].mxu0
    %v264 = vadd.f32 0.0, %v263
    %v265 = vpop.f32.mrb[0].mxu0
    %v266 = vpop.f32.mrb[0].mxu0
    %v267 = vadd.f32 0.0, %v266
    %v268 = vpop.f32.mrb[0].mxu0
    %269 = vmatprep.mubr.bf16.mxu0 0
    %270 = vmatmul.mubr.bf16.gmra.mrb[0].mxu0 %v220
    %v271 = vpop.f32.mrb[0].mxu0
    %v272 = vadd.f32 0.0, %v271
    %v273 = vpop.f32.mrb[0].mxu0
    %v274 = vpop.f32.mrb[0].mxu0
    %v275 = vadd.f32 0.0, %v274
    %v276 = vpop.f32.mrb[0].mxu0
    %277 = vmatprep.mubr.bf16.mxu0 0
    %278 = vmatmul.mubr.bf16.gmra.mrb[0].mxu0 %v223
    %v279 = vpop.f32.mrb[0].mxu0
    %v280 = vadd.f32 0.0, %v279
    %v281 = vpop.f32.mrb[0].mxu0
    %v282 = vpop.f32.mrb[0].mxu0
    %v283 = vpop.f32.mrb[0].mxu0
    %284 = vdwg.mxu0
    %v290 = vcombine.high %v264, %v264
    %v292 = vunpack.c.l.s4 1983009808
    %v293 = vunpack.c.0.s8 %v292
    %v294 = vlaneseq
    %v295 = vshrl.u32 %v294, 7
    %v296 = vsub.s32 %v293, %v295
    %v297 = vrot.slane %v264, %v296
    %v299 = vunpack.c.l.s4 1983009808
    %v300 = vunpack.c.0.s8 %v299
    %v301 = vlaneseq
    %v302 = vshrl.u32 %v301, 7
    %v303 = vsub.s32 %v300, %v302
    %v304 = vrot.slane %v290, %v303
    %v305 = vcombine.high %v297, %v297
    %v306 = vcombine.high %v304, %v304
    %v307 = vcombine.high %v267, %v267
    %v309 = vunpack.c.l.s4 1983009808
    %v310 = vunpack.c.0.s8 %v309
    %v311 = vlaneseq
    %v312 = vshrl.u32 %v311, 7
    %v313 = vsub.s32 %v310, %v312
    %v314 = vrot.slane %v267, %v313
    %v316 = vunpack.c.l.s4 1983009808
    %v317 = vunpack.c.0.s8 %v316
    %v318 = vlaneseq
    %v319 = vshrl.u32 %v318, 7
    %v320 = vsub.s32 %v317, %v319
    %v321 = vrot.slane %v307, %v320
    %v322 = vcombine.high %v314, %v314
    %v323 = vcombine.high %v321, %v321
    %v324 = vcombine.high %v272, %v272
    %v326 = vunpack.c.l.s4 1983009808
    %v327 = vunpack.c.0.s8 %v326
    %v328 = vlaneseq
    %v329 = vshrl.u32 %v328, 7
    %v330 = vsub.s32 %v327, %v329
    %v331 = vrot.slane %v272, %v330
    %v333 = vunpack.c.l.s4 1983009808
    %v334 = vunpack.c.0.s8 %v333
    %v335 = vlaneseq
    %v336 = vshrl.u32 %v335, 7
    %v337 = vsub.s32 %v334, %v336
    %v338 = vrot.slane %v324, %v337
    %v339 = vcombine.high %v331, %v331
    %v340 = vcombine.high %v338, %v338
    %v341 = vcombine.high %v275, %v275
    %v343 = vunpack.c.l.s4 1983009808
    %v344 = vunpack.c.0.s8 %v343
    %v345 = vlaneseq
    %v346 = vshrl.u32 %v345, 7
    %v347 = vsub.s32 %v344, %v346
    %v348 = vrot.slane %v275, %v347
    %v350 = vunpack.c.l.s4 1983009808
    %v351 = vunpack.c.0.s8 %v350
    %v352 = vlaneseq
    %v353 = vshrl.u32 %v352, 7
    %v354 = vsub.s32 %v351, %v353
    %v355 = vrot.slane %v341, %v354
    %v356 = vcombine.high %v348, %v348
    %v357 = vcombine.high %v355, %v355
    %v359 = vunpack.c.l.s4 1983009808
    %v360 = vunpack.c.0.s8 %v359
    %v361 = vlaneseq
    %v362 = vshrl.u32 %v361, 7
    %v363 = vsub.s32 %v360, %v362
    %v364 = vrot.slane %v280, %v363
    %v365 = vcombine.high %v364, %v364
    %s384 = scalar_lea.vmem %s1, 36
    %v385 = vld [vmem:[%s384] sm:$0xf]
    %v386 = vld [vmem:[%s384 + $0x4] sm:$0xf]
    %v387 = vld [vmem:[%s384 + $0x8] sm:$0xf]
    %v388 = vld [vmem:[%s384 + $0xc] sm:$0xf]
    %v389 = vld [vmem:[%s384 + $0x10] sm:$0xf]
    %v390 = vld [vmem:[%s384 + $0x14] sm:$0xf]
    %v391 = vld [vmem:[%s384 + $0x18] sm:$0xf]
    %v392 = vld [vmem:[%s384 + $0x1c] sm:$0xf]
    %v393 = vld [vmem:[%s384 + $0x20] sm:$0x7]
    %v403 = vunpack.c.l.b16 %v385
    %v404 = vunpack.c.l.b16 %v386
    %v405 = vunpack.c.l.b16 %v387
    %v406 = vunpack.c.l.b16 %v388
    %v407 = vunpack.c.l.b16 %v389
    %v408 = vunpack.c.l.b16 %v390
    %v409 = vunpack.c.l.b16 %v391
    %v410 = vunpack.c.l.b16 %v392
    %v411 = vunpack.c.l.b16 %v393
    %v412 = vpack.c.b16 %v404, %v403
    %v413 = vpack.c.b16 %v406, %v405
    %v414 = vpack.c.b16 %v408, %v407
    %v415 = vpack.c.b16 %v410, %v409
    %v416 = vpack.c.b16 %v411, %v411
    %v422 = vsel %vm225, %v416, 0
    %424 = vmatprep.subr.bf16.mxu0 0
    %425 = vmatpush1.bf16.msra.mxu0 %v412
    %426 = vmatprep.subr.bf16.mxu0 0
    %427 = vmatpush1.bf16.msra.mxu0 %v413
    %428 = vmatprep.subr.bf16.mxu0 0
    %429 = vmatpush1.bf16.msra.mxu0 %v414
    %430 = vmatprep.subr.bf16.mxu0 0
    %431 = vmatpush1.bf16.msra.mxu0 %v415
    %432 = vmatprep.subr.bf16.mxu0 0
    %433 = vmatpush1.bf16.msra.mxu0 %v422
    %434 = vmatprep.subr.bf16.mxu0 0
    %435 = vmatpush1.bf16.msra.mxu0 0
    %436 = vmatprep.subr.bf16.mxu0 0
    %437 = vmatpush1.bf16.msra.mxu0 0
    %438 = vmatprep.subr.bf16.mxu0 0
    %439 = vmatpush1.bf16.msra.mxu0 0
    %440 = vmatprep.subr.bf16.mxu0 0
    %441 = vmatpush1.bf16.msra.mxu0 0
    %442 = vmatprep.subr.bf16.mxu0 0
    %443 = vmatpush1.bf16.msra.mxu0 0
    %444 = vmatprep.subr.bf16.mxu0 0
    %445 = vmatpush1.bf16.msra.mxu0 0
    %446 = vmatprep.subr.bf16.mxu0 0
    %447 = vmatpush1.bf16.msra.mxu0 0
    %448 = vmatprep.subr.bf16.mxu0 0
    %449 = vmatpush1.bf16.msra.mxu0 0
    %450 = vmatprep.subr.bf16.mxu0 0
    %451 = vmatpush1.bf16.msra.mxu0 0
    %452 = vmatprep.subr.bf16.mxu0 0
    %453 = vmatpush1.bf16.msra.mxu0 0
    %454 = vmatprep.subr.bf16.mxu0 0
    %455 = vmatpush1.bf16.msra.mxu0 0
    %456 = vmatprep.mubr.bf16.mxu0 0
    %457 = vmatmul.mubr.bf16.gmra.mrb[0].mxu0 %v217
    %v458 = vpop.f32.mrb[0].mxu0
    %v459 = vadd.f32 0.0, %v458
    %v460 = vpop.f32.mrb[0].mxu0
    %v461 = vpop.f32.mrb[0].mxu0
    %v462 = vadd.f32 0.0, %v461
    %v463 = vpop.f32.mrb[0].mxu0
    %464 = vmatprep.mubr.bf16.mxu0 0
    %465 = vmatmul.mubr.bf16.gmra.mrb[0].mxu0 %v220
    %v466 = vpop.f32.mrb[0].mxu0
    %v467 = vadd.f32 0.0, %v466
    %v468 = vpop.f32.mrb[0].mxu0
    %v469 = vpop.f32.mrb[0].mxu0
    %v470 = vadd.f32 0.0, %v469
    %v471 = vpop.f32.mrb[0].mxu0
    %472 = vmatprep.mubr.bf16.mxu0 0
    %473 = vmatmul.mubr.bf16.gmra.mrb[0].mxu0 %v223
    %v474 = vpop.f32.mrb[0].mxu0
    %v475 = vadd.f32 0.0, %v474
    %v476 = vpop.f32.mrb[0].mxu0
    %v477 = vpop.f32.mrb[0].mxu0
    %v478 = vpop.f32.mrb[0].mxu0
    %479 = vdwg.mxu0
    %v485 = vcombine.high %v459, %v459
    %v487 = vunpack.c.l.s4 1983009808
    %v488 = vunpack.c.0.s8 %v487
    %v489 = vlaneseq
    %v490 = vshrl.u32 %v489, 7
    %v491 = vsub.s32 %v488, %v490
    %v492 = vrot.slane %v459, %v491
    %v494 = vunpack.c.l.s4 1983009808
    %v495 = vunpack.c.0.s8 %v494
    %v496 = vlaneseq
    %v497 = vshrl.u32 %v496, 7
    %v498 = vsub.s32 %v495, %v497
    %v499 = vrot.slane %v485, %v498
    %v500 = vcombine.high %v492, %v492
    %v501 = vcombine.high %v499, %v499
    %v502 = vcombine.high %v462, %v462
    %v504 = vunpack.c.l.s4 1983009808
    %v505 = vunpack.c.0.s8 %v504
    %v506 = vlaneseq
    %v507 = vshrl.u32 %v506, 7
    %v508 = vsub.s32 %v505, %v507
    %v509 = vrot.slane %v462, %v508
    %v511 = vunpack.c.l.s4 1983009808
    %v512 = vunpack.c.0.s8 %v511
    %v513 = vlaneseq
    %v514 = vshrl.u32 %v513, 7
    %v515 = vsub.s32 %v512, %v514
    %v516 = vrot.slane %v502, %v515
    %v517 = vcombine.high %v509, %v509
    %v518 = vcombine.high %v516, %v516
    %v519 = vcombine.high %v467, %v467
    %v521 = vunpack.c.l.s4 1983009808
    %v522 = vunpack.c.0.s8 %v521
    %v523 = vlaneseq
    %v524 = vshrl.u32 %v523, 7
    %v525 = vsub.s32 %v522, %v524
    %v526 = vrot.slane %v467, %v525
    %v528 = vunpack.c.l.s4 1983009808
    %v529 = vunpack.c.0.s8 %v528
    %v530 = vlaneseq
    %v531 = vshrl.u32 %v530, 7
    %v532 = vsub.s32 %v529, %v531
    %v533 = vrot.slane %v519, %v532
    %v534 = vcombine.high %v526, %v526
    %v535 = vcombine.high %v533, %v533
    %v536 = vcombine.high %v470, %v470
    %v538 = vunpack.c.l.s4 1983009808
    %v539 = vunpack.c.0.s8 %v538
    %v540 = vlaneseq
    %v541 = vshrl.u32 %v540, 7
    %v542 = vsub.s32 %v539, %v541
    %v543 = vrot.slane %v470, %v542
    %v545 = vunpack.c.l.s4 1983009808
    %v546 = vunpack.c.0.s8 %v545
    %v547 = vlaneseq
    %v548 = vshrl.u32 %v547, 7
    %v549 = vsub.s32 %v546, %v548
    %v550 = vrot.slane %v536, %v549
    %v551 = vcombine.high %v543, %v543
    %v552 = vcombine.high %v550, %v550
    %v553 = vcombine.high %v475, %v475
    %v555 = vunpack.c.l.s4 1983009808
    %v556 = vunpack.c.0.s8 %v555
    %v557 = vlaneseq
    %v558 = vshrl.u32 %v557, 7
    %v559 = vsub.s32 %v556, %v558
    %v560 = vrot.slane %v475, %v559
    %v562 = vunpack.c.l.s4 1983009808
    %v563 = vunpack.c.0.s8 %v562
    %v564 = vlaneseq
    %v565 = vshrl.u32 %v564, 7
    %v566 = vsub.s32 %v563, %v565
    %v567 = vrot.slane %v553, %v566
    %v568 = vcombine.high %v560, %v560
    %v587 = vadd.f32 %v297, %v500
    %v588 = vadd.f32 %v305, %v499
    %v589 = vadd.f32 %v304, %v501
    %v590 = vadd.f32 %v306, %v509
    %v591 = vadd.f32 %v314, %v517
    %v592 = vadd.f32 %v322, %v516
    %v593 = vadd.f32 %v321, %v518
    %v594 = vadd.f32 %v323, %v526
    %v595 = vadd.f32 %v331, %v534
    %v596 = vadd.f32 %v339, %v533
    %v597 = vadd.f32 %v338, %v535
    %v598 = vadd.f32 %v340, %v543
    %v599 = vadd.f32 %v348, %v551
    %v600 = vadd.f32 %v356, %v550
    %v601 = vadd.f32 %v355, %v552
    %v602 = vadd.f32 %v357, %v560
    %v603 = vadd.f32 %v364, %v568
    %v604 = vadd.f32 %v365, %v567
    %s605 = scalar_lea.vmem %s1, 72
    %v606 = vld [vmem:[%s605] sm:$0xf]
    %v607 = vld [vmem:[%s605 + $0x4] sm:$0xf]
    %v608 = vld [vmem:[%s605 + $0x8] sm:$0xf]
    %v609 = vld [vmem:[%s605 + $0xc] sm:$0xf]
    %v610 = vld [vmem:[%s605 + $0x10] sm:$0xf]
    %v611 = vld [vmem:[%s605 + $0x14] sm:$0xf]
    %v612 = vld [vmem:[%s605 + $0x18] sm:$0xf]
    %v613 = vld [vmem:[%s605 + $0x1c] sm:$0xf]
    %v614 = vld [vmem:[%s605 + $0x20] sm:$0x7]
    %v624 = vunpack.c.l.b16 %v606
    %v625 = vunpack.c.l.b16 %v607
    %v626 = vunpack.c.l.b16 %v608
    %v627 = vunpack.c.l.b16 %v609
    %v628 = vunpack.c.l.b16 %v610
    %v629 = vunpack.c.l.b16 %v611
    %v630 = vunpack.c.l.b16 %v612
    %v631 = vunpack.c.l.b16 %v613
    %v632 = vunpack.c.l.b16 %v614
    %v633 = vpack.c.b16 %v625, %v624
    %v634 = vpack.c.b16 %v627, %v626
    %v635 = vpack.c.b16 %v629, %v628
    %v636 = vpack.c.b16 %v631, %v630
    %v637 = vpack.c.b16 %v632, %v632
    %v643 = vsel %vm225, %v637, 0
    %645 = vmatprep.subr.bf16.mxu0 0
    %646 = vmatpush1.bf16.msra.mxu0 %v633
    %647 = vmatprep.subr.bf16.mxu0 0
    %648 = vmatpush1.bf16.msra.mxu0 %v634
    %649 = vmatprep.subr.bf16.mxu0 0
    %650 = vmatpush1.bf16.msra.mxu0 %v635
    %651 = vmatprep.subr.bf16.mxu0 0
    %652 = vmatpush1.bf16.msra.mxu0 %v636
    %653 = vmatprep.subr.bf16.mxu0 0
    %654 = vmatpush1.bf16.msra.mxu0 %v643
    %655 = vmatprep.subr.bf16.mxu0 0
    %656 = vmatpush1.bf16.msra.mxu0 0
    %657 = vmatprep.subr.bf16.mxu0 0
    %658 = vmatpush1.bf16.msra.mxu0 0
    %659 = vmatprep.subr.bf16.mxu0 0
    %660 = vmatpush1.bf16.msra.mxu0 0
    %661 = vmatprep.subr.bf16.mxu0 0
    %662 = vmatpush1.bf16.msra.mxu0 0
    %663 = vmatprep.subr.bf16.mxu0 0
    %664 = vmatpush1.bf16.msra.mxu0 0
    %665 = vmatprep.subr.bf16.mxu0 0
    %666 = vmatpush1.bf16.msra.mxu0 0
    %667 = vmatprep.subr.bf16.mxu0 0
    %668 = vmatpush1.bf16.msra.mxu0 0
    %669 = vmatprep.subr.bf16.mxu0 0
    %670 = vmatpush1.bf16.msra.mxu0 0
    %671 = vmatprep.subr.bf16.mxu0 0
    %672 = vmatpush1.bf16.msra.mxu0 0
    %673 = vmatprep.subr.bf16.mxu0 0
    %674 = vmatpush1.bf16.msra.mxu0 0
    %675 = vmatprep.subr.bf16.mxu0 0
    %676 = vmatpush1.bf16.msra.mxu0 0
    %677 = vmatprep.mubr.bf16.mxu0 0
    %678 = vmatmul.mubr.bf16.gmra.mrb[0].mxu0 %v217
    %v679 = vpop.f32.mrb[0].mxu0
    %v680 = vadd.f32 0.0, %v679
    %v681 = vpop.f32.mrb[0].mxu0
    %v682 = vpop.f32.mrb[0].mxu0
    %v683 = vadd.f32 0.0, %v682
    %v684 = vpop.f32.mrb[0].mxu0
    %685 = vmatprep.mubr.bf16.mxu0 0
    %686 = vmatmul.mubr.bf16.gmra.mrb[0].mxu0 %v220
    %v687 = vpop.f32.mrb[0].mxu0
    %v688 = vadd.f32 0.0, %v687
    %v689 = vpop.f32.mrb[0].mxu0
    %v690 = vpop.f32.mrb[0].mxu0
    %v691 = vadd.f32 0.0, %v690
    %v692 = vpop.f32.mrb[0].mxu0
    %693 = vmatprep.mubr.bf16.mxu0 0
    %694 = vmatmul.mubr.bf16.gmra.mrb[0].mxu0 %v223
    %v695 = vpop.f32.mrb[0].mxu0
    %v696 = vadd.f32 0.0, %v695
    %v697 = vpop.f32.mrb[0].mxu0
    %v698 = vpop.f32.mrb[0].mxu0
    %v699 = vpop.f32.mrb[0].mxu0
    %700 = vdwg.mxu0
    %v706 = vcombine.high %v680, %v680
    %v708 = vunpack.c.l.s4 1983009808
    %v709 = vunpack.c.0.s8 %v708
    %v710 = vlaneseq
    %v711 = vshrl.u32 %v710, 7
    %v712 = vsub.s32 %v709, %v711
    %v713 = vrot.slane %v706, %v712
    %v714 = vcombine.high %v713, %v713
    %v715 = vcombine.high %v683, %v683
    %v717 = vunpack.c.l.s4 1983009808
    %v718 = vunpack.c.0.s8 %v717
    %v719 = vlaneseq
    %v720 = vshrl.u32 %v719, 7
    %v721 = vsub.s32 %v718, %v720
    %v722 = vrot.slane %v683, %v721
    %v724 = vunpack.c.l.s4 1983009808
    %v725 = vunpack.c.0.s8 %v724
    %v726 = vlaneseq
    %v727 = vshrl.u32 %v726, 7
    %v728 = vsub.s32 %v725, %v727
    %v729 = vrot.slane %v715, %v728
    %v730 = vcombine.high %v722, %v722
    %v731 = vcombine.high %v729, %v729
    %v732 = vcombine.high %v688, %v688
    %v734 = vunpack.c.l.s4 1983009808
    %v735 = vunpack.c.0.s8 %v734
    %v736 = vlaneseq
    %v737 = vshrl.u32 %v736, 7
    %v738 = vsub.s32 %v735, %v737
    %v739 = vrot.slane %v688, %v738
    %v741 = vunpack.c.l.s4 1983009808
    %v742 = vunpack.c.0.s8 %v741
    %v743 = vlaneseq
    %v744 = vshrl.u32 %v743, 7
    %v745 = vsub.s32 %v742, %v744
    %v746 = vrot.slane %v732, %v745
    %v747 = vcombine.high %v739, %v739
    %v748 = vcombine.high %v746, %v746
    %v749 = vcombine.high %v691, %v691
    %v751 = vunpack.c.l.s4 1983009808
    %v752 = vunpack.c.0.s8 %v751
    %v753 = vlaneseq
    %v754 = vshrl.u32 %v753, 7
    %v755 = vsub.s32 %v752, %v754
    %v756 = vrot.slane %v691, %v755
    %v758 = vunpack.c.l.s4 1983009808
    %v759 = vunpack.c.0.s8 %v758
    %v760 = vlaneseq
    %v761 = vshrl.u32 %v760, 7
    %v762 = vsub.s32 %v759, %v761
    %v763 = vrot.slane %v749, %v762
    %v764 = vcombine.high %v756, %v756
    %v765 = vcombine.high %v763, %v763
    %v766 = vcombine.high %v696, %v696
    %v768 = vunpack.c.l.s4 1983009808
    %v769 = vunpack.c.0.s8 %v768
    %v770 = vlaneseq
    %v771 = vshrl.u32 %v770, 7
    %v772 = vsub.s32 %v769, %v771
    %v773 = vrot.slane %v696, %v772
    %v775 = vunpack.c.l.s4 1983009808
    %v776 = vunpack.c.0.s8 %v775
    %v777 = vlaneseq
    %v778 = vshrl.u32 %v777, 7
    %v779 = vsub.s32 %v776, %v778
    %v780 = vrot.slane %v766, %v779
    %v781 = vcombine.high %v773, %v773
    %v782 = vcombine.high %v780, %v780
    %v801 = vadd.f32 %v587, %v713
    %v802 = vadd.f32 %v588, %v714
    %v803 = vadd.f32 %v589, %v722
    %v804 = vadd.f32 %v590, %v730
    %v805 = vadd.f32 %v591, %v729
    %v806 = vadd.f32 %v592, %v731
    %v807 = vadd.f32 %v593, %v739
    %v808 = vadd.f32 %v594, %v747
    %v809 = vadd.f32 %v595, %v746
    %v810 = vadd.f32 %v596, %v748
    %v811 = vadd.f32 %v597, %v756
    %v812 = vadd.f32 %v598, %v764
    %v813 = vadd.f32 %v599, %v763
    %v814 = vadd.f32 %v600, %v765
    %v815 = vadd.f32 %v601, %v773
    %v816 = vadd.f32 %v602, %v781
    %v817 = vadd.f32 %v603, %v780
    %v818 = vadd.f32 %v604, %v782
    %v819 = vlaneseq
    %v820 = vshrl.u32 %v819, 7
    %v821 = vsub.s32 0, %v820
    %v822 = vrot.slane %v16, %v821
    %v823 = vadd.f32 %v801, %v822
    %v824 = vadd.f32 %v802, %v822
    %v825 = vadd.f32 %v803, %v822
    %v826 = vadd.f32 %v804, %v822
    %v827 = vadd.f32 %v805, %v822
    %v828 = vadd.f32 %v806, %v822
    %v829 = vadd.f32 %v807, %v822
    %v830 = vadd.f32 %v808, %v822
    %v831 = vadd.f32 %v809, %v822
    %v832 = vadd.f32 %v810, %v822
    %v833 = vadd.f32 %v811, %v822
    %v834 = vadd.f32 %v812, %v822
    %v835 = vadd.f32 %v813, %v822
    %v836 = vadd.f32 %v814, %v822
    %v837 = vadd.f32 %v815, %v822
    %v838 = vadd.f32 %v816, %v822
    %v839 = vadd.f32 %v817, %v822
    %v840 = vadd.f32 %v818, %v822
    %v841 = vmax.f32 %v823, 0.0
    %v842 = vmax.f32 %v824, 0.0
    %v843 = vmax.f32 %v825, 0.0
    %v844 = vmax.f32 %v826, 0.0
    %v845 = vmax.f32 %v827, 0.0
    %v846 = vmax.f32 %v828, 0.0
    %v847 = vmax.f32 %v829, 0.0
    %v848 = vmax.f32 %v830, 0.0
    %v849 = vmax.f32 %v831, 0.0
    %v850 = vmax.f32 %v832, 0.0
    %v851 = vmax.f32 %v833, 0.0
    %v852 = vmax.f32 %v834, 0.0
    %v853 = vmax.f32 %v835, 0.0
    %v854 = vmax.f32 %v836, 0.0
    %v855 = vmax.f32 %v837, 0.0
    %v856 = vmax.f32 %v838, 0.0
    %v857 = vmax.f32 %v839, 0.0
    %v858 = vmax.f32 %v840, 0.0
    %v859 = vmax.f32 %v841, %v842
    %v860 = vmax.f32 %v843, %v844
    %v861 = vmax.f32 %v845, %v846
    %v862 = vmax.f32 %v847, %v848
    %v863 = vmax.f32 %v849, %v850
    %v864 = vmax.f32 %v851, %v852
    %v865 = vmax.f32 %v853, %v854
    %v866 = vmax.f32 %v855, %v856
    %v867 = vmax.f32 %v857, %v858
    %v868 = vpack.c.bf16 %v859, %v859
    %v869 = vpack.c.bf16 %v860, %v860
    %v870 = vpack.c.bf16 %v861, %v861
    %v871 = vpack.c.bf16 %v862, %v862
    %v872 = vpack.c.bf16 %v863, %v863
    %v873 = vpack.c.bf16 %v864, %v864
    %v874 = vpack.c.bf16 %v865, %v865
    %v875 = vpack.c.bf16 %v866, %v866
    %v876 = vpack.c.bf16 %v867, %v867
    %s877 = scalar_lea.vmem %s1, 108
    %v878 = vld [vmem:[%s877] sm:$0xf]
    %v879 = vld [vmem:[%s877 + $0x4] sm:$0xf]
    %v880 = vld [vmem:[%s877 + $0x8] sm:$0xf]
    %v881 = vld [vmem:[%s877 + $0xc] sm:$0xf]
    %v882 = vld [vmem:[%s877 + $0x10] sm:$0xf]
    %v883 = vld [vmem:[%s877 + $0x14] sm:$0xf]
    %v884 = vld [vmem:[%s877 + $0x18] sm:$0xf]
    %v885 = vld [vmem:[%s877 + $0x1c] sm:$0xf]
    %v886 = vld [vmem:[%s877 + $0x24] sm:$0xf]
    %v887 = vld [vmem:[%s877 + $0x28] sm:$0xf]
    %v888 = vld [vmem:[%s877 + $0x2c] sm:$0xf]
    %v889 = vld [vmem:[%s877 + $0x30] sm:$0xf]
    %v890 = vld [vmem:[%s877 + $0x34] sm:$0xf]
    %v891 = vld [vmem:[%s877 + $0x38] sm:$0xf]
    %v892 = vld [vmem:[%s877 + $0x3c] sm:$0xf]
    %v893 = vld [vmem:[%s877 + $0x40] sm:$0xf]
    %v894 = vld [vmem:[%s877 + $0x48] sm:$0xf]
    %v895 = vld [vmem:[%s877 + $0x4c] sm:$0xf]
    %v896 = vld [vmem:[%s877 + $0x50] sm:$0xf]
    %v897 = vld [vmem:[%s877 + $0x54] sm:$0xf]
    %v898 = vld [vmem:[%s877 + $0x58] sm:$0xf]
    %v899 = vld [vmem:[%s877 + $0x5c] sm:$0xf]
    %v900 = vld [vmem:[%s877 + $0x60] sm:$0xf]
    %v901 = vld [vmem:[%s877 + $0x64] sm:$0xf]
    %v902 = vld [vmem:[%s877 + $0x6c] sm:$0xf]
    %v903 = vld [vmem:[%s877 + $0x70] sm:$0xf]
    %v904 = vld [vmem:[%s877 + $0x74] sm:$0xf]
    %v905 = vld [vmem:[%s877 + $0x78] sm:$0xf]
    %v906 = vld [vmem:[%s877 + $0x7c] sm:$0xf]
    %v907 = vld [vmem:[%s877 + $0x80] sm:$0xf]
    %v908 = vld [vmem:[%s877 + $0x84] sm:$0xf]
    %v909 = vld [vmem:[%s877 + $0x88] sm:$0xf]
    %v910 = vld [vmem:[%s877 + $0x90] sm:$0xf]
    %v911 = vld [vmem:[%s877 + $0x94] sm:$0xf]
    %v912 = vld [vmem:[%s877 + $0x98] sm:$0xf]
    %v913 = vld [vmem:[%s877 + $0x9c] sm:$0xf]
    %v914 = vld [vmem:[%s877 + $0xa0] sm:$0xf]
    %v915 = vld [vmem:[%s877 + $0xa4] sm:$0xf]
    %v916 = vld [vmem:[%s877 + $0xa8] sm:$0xf]
    %v917 = vld [vmem:[%s877 + $0xac] sm:$0xf]
    %v918 = vld [vmem:[%s877 + $0xb4] sm:$0xf]
    %v919 = vld [vmem:[%s877 + $0xb8] sm:$0xf]
    %v920 = vld [vmem:[%s877 + $0xbc] sm:$0xf]
    %v921 = vld [vmem:[%s877 + $0xc0] sm:$0xf]
    %v922 = vld [vmem:[%s877 + $0xc4] sm:$0xf]
    %v923 = vld [vmem:[%s877 + $0xc8] sm:$0xf]
    %v924 = vld [vmem:[%s877 + $0xcc] sm:$0xf]
    %v925 = vld [vmem:[%s877 + $0xd0] sm:$0xf]
    %v926 = vld [vmem:[%s877 + $0xd8] sm:$0xf]
    %v927 = vld [vmem:[%s877 + $0xdc] sm:$0xf]
    %v928 = vld [vmem:[%s877 + $0xe0] sm:$0xf]
    %v929 = vld [vmem:[%s877 + $0xe4] sm:$0xf]
    %v930 = vld [vmem:[%s877 + $0xe8] sm:$0xf]
    %v931 = vld [vmem:[%s877 + $0xec] sm:$0xf]
    %v932 = vld [vmem:[%s877 + $0xf0] sm:$0xf]
    %v933 = vld [vmem:[%s877 + $0xf4] sm:$0xf]
    %v934 = vld [vmem:[%s877 + $0xfc] sm:$0xf]
    %v935 = vld [vmem:[%s877 + $0x100] sm:$0xf]
    %v936 = vld [vmem:[%s877 + $0x104] sm:$0xf]
    %v937 = vld [vmem:[%s877 + $0x108] sm:$0xf]
    %v938 = vld [vmem:[%s877 + $0x10c] sm:$0xf]
    %v939 = vld [vmem:[%s877 + $0x110] sm:$0xf]
    %v940 = vld [vmem:[%s877 + $0x114] sm:$0xf]
    %v941 = vld [vmem:[%s877 + $0x118] sm:$0xf]
    %v942 = vld [vmem:[%s877 + $0x120] sm:$0xf]
    %v943 = vld [vmem:[%s877 + $0x124] sm:$0xf]
    %v944 = vld [vmem:[%s877 + $0x128] sm:$0xf]
    %v945 = vld [vmem:[%s877 + $0x12c] sm:$0xf]
    %v946 = vld [vmem:[%s877 + $0x130] sm:$0xf]
    %v947 = vld [vmem:[%s877 + $0x134] sm:$0xf]
    %v948 = vld [vmem:[%s877 + $0x138] sm:$0xf]
    %v949 = vld [vmem:[%s877 + $0x13c] sm:$0xf]
    %v958 = vunpack.c.l.b16 %v878
    %v959 = vunpack.c.l.b16 %v879
    %v960 = vunpack.c.l.b16 %v880
    %v961 = vunpack.c.l.b16 %v881
    %v962 = vunpack.c.l.b16 %v882
    %v963 = vunpack.c.l.b16 %v883
    %v964 = vunpack.c.l.b16 %v884
    %v965 = vunpack.c.l.b16 %v885
    %v966 = vpack.c.b16 %v959, %v958
    %v967 = vpack.c.b16 %v961, %v960
    %v968 = vpack.c.b16 %v963, %v962
    %v969 = vpack.c.b16 %v965, %v964
    %vm974 = vcmask 523264
    %v976 = vsel %vm974, %v868, 0
    %978 = vmatprep.subr.bf16.mxu0 0
    %979 = vmatpush1.bf16.msra.mxu0 %v966
    %980 = vmatprep.subr.bf16.mxu0 0
    %981 = vmatpush1.bf16.msra.mxu0 %v967
    %982 = vmatprep.subr.bf16.mxu0 0
    %983 = vmatpush1.bf16.msra.mxu0 %v968
    %984 = vmatprep.subr.bf16.mxu0 0
    %985 = vmatpush1.bf16.msra.mxu0 %v969
    %986 = vmatprep.subr.bf16.mxu0 0
    %987 = vmatpush1.bf16.msra.mxu0 0
    %988 = vmatprep.subr.bf16.mxu0 0
    %989 = vmatpush1.bf16.msra.mxu0 0
    %990 = vmatprep.subr.bf16.mxu0 0
    %991 = vmatpush1.bf16.msra.mxu0 0
    %992 = vmatprep.subr.bf16.mxu0 0
    %993 = vmatpush1.bf16.msra.mxu0 0
    %994 = vmatprep.subr.bf16.mxu0 0
    %995 = vmatpush1.bf16.msra.mxu0 0
    %996 = vmatprep.subr.bf16.mxu0 0
    %997 = vmatpush1.bf16.msra.mxu0 0
    %998 = vmatprep.subr.bf16.mxu0 0
    %999 = vmatpush1.bf16.msra.mxu0 0
    %1000 = vmatprep.subr.bf16.mxu0 0
    %1001 = vmatpush1.bf16.msra.mxu0 0
    %1002 = vmatprep.subr.bf16.mxu0 0
    %1003 = vmatpush1.bf16.msra.mxu0 0
    %1004 = vmatprep.subr.bf16.mxu0 0
    %1005 = vmatpush1.bf16.msra.mxu0 0
    %1006 = vmatprep.subr.bf16.mxu0 0
    %1007 = vmatpush1.bf16.msra.mxu0 0
    %1008 = vmatprep.subr.bf16.mxu0 0
    %1009 = vmatpush1.bf16.msra.mxu0 0
    %1010 = vmatprep.mubr.bf16.mxu0 0
    %1011 = vmatmul.mubr.bf16.gmra.mrb[0].mxu0 %v976
    %v1012 = vpop.f32.mrb[0].mxu0
    %v1013 = vadd.f32 0.0, %v1012
    %v1014 = vpop.f32.mrb[0].mxu0
    %v1015 = vpop.f32.mrb[0].mxu0
    %v1016 = vpop.f32.mrb[0].mxu0
    %1017 = vdwg.mxu0
    %v1026 = vunpack.c.l.b16 %v886
    %v1027 = vunpack.c.l.b16 %v887
    %v1028 = vunpack.c.l.b16 %v888
    %v1029 = vunpack.c.l.b16 %v889
    %v1030 = vunpack.c.l.b16 %v890
    %v1031 = vunpack.c.l.b16 %v891
    %v1032 = vunpack.c.l.b16 %v892
    %v1033 = vunpack.c.l.b16 %v893
    %v1034 = vpack.c.b16 %v1027, %v1026
    %v1035 = vpack.c.b16 %v1029, %v1028
    %v1036 = vpack.c.b16 %v1031, %v1030
    %v1037 = vpack.c.b16 %v1033, %v1032
    %v1043 = vsel %vm974, %v869, 0
    %1045 = vmatprep.subr.bf16.mxu0 0
    %1046 = vmatpush1.bf16.msra.mxu0 %v1034
    %1047 = vmatprep.subr.bf16.mxu0 0
    %1048 = vmatpush1.bf16.msra.mxu0 %v1035
    %1049 = vmatprep.subr.bf16.mxu0 0
    %1050 = vmatpush1.bf16.msra.mxu0 %v1036
    %1051 = vmatprep.subr.bf16.mxu0 0
    %1052 = vmatpush1.bf16.msra.mxu0 %v1037
    %1053 = vmatprep.subr.bf16.mxu0 0
    %1054 = vmatpush1.bf16.msra.mxu0 0
    %1055 = vmatprep.subr.bf16.mxu0 0
    %1056 = vmatpush1.bf16.msra.mxu0 0
    %1057 = vmatprep.subr.bf16.mxu0 0
    %1058 = vmatpush1.bf16.msra.mxu0 0
    %1059 = vmatprep.subr.bf16.mxu0 0
    %1060 = vmatpush1.bf16.msra.mxu0 0
    %1061 = vmatprep.subr.bf16.mxu0 0
    %1062 = vmatpush1.bf16.msra.mxu0 0
    %1063 = vmatprep.subr.bf16.mxu0 0
    %1064 = vmatpush1.bf16.msra.mxu0 0
    %1065 = vmatprep.subr.bf16.mxu0 0
    %1066 = vmatpush1.bf16.msra.mxu0 0
    %1067 = vmatprep.subr.bf16.mxu0 0
    %1068 = vmatpush1.bf16.msra.mxu0 0
    %1069 = vmatprep.subr.bf16.mxu0 0
    %1070 = vmatpush1.bf16.msra.mxu0 0
    %1071 = vmatprep.subr.bf16.mxu0 0
    %1072 = vmatpush1.bf16.msra.mxu0 0
    %1073 = vmatprep.subr.bf16.mxu0 0
    %1074 = vmatpush1.bf16.msra.mxu0 0
    %1075 = vmatprep.subr.bf16.mxu0 0
    %1076 = vmatpush1.bf16.msra.mxu0 0
    %1077 = vmatprep.mubr.bf16.mxu0 0
    %1078 = vmatmul.mubr.bf16.gmra.mrb[0].mxu0 %v1043
    %v1079 = vpop.f32.mrb[0].mxu0
    %v1080 = vadd.f32 0.0, %v1079
    %v1081 = vpop.f32.mrb[0].mxu0
    %v1082 = vpop.f32.mrb[0].mxu0
    %v1083 = vpop.f32.mrb[0].mxu0
    %1084 = vdwg.mxu0
    %v1093 = vunpack.c.l.b16 %v894
    %v1094 = vunpack.c.l.b16 %v895
    %v1095 = vunpack.c.l.b16 %v896
    %v1096 = vunpack.c.l.b16 %v897
    %v1097 = vunpack.c.l.b16 %v898
    %v1098 = vunpack.c.l.b16 %v899
    %v1099 = vunpack.c.l.b16 %v900
    %v1100 = vunpack.c.l.b16 %v901
    %v1101 = vpack.c.b16 %v1094, %v1093
    %v1102 = vpack.c.b16 %v1096, %v1095
    %v1103 = vpack.c.b16 %v1098, %v1097
    %v1104 = vpack.c.b16 %v1100, %v1099
    %v1110 = vsel %vm974, %v870, 0
    %1112 = vmatprep.subr.bf16.mxu0 0
    %1113 = vmatpush1.bf16.msra.mxu0 %v1101
    %1114 = vmatprep.subr.bf16.mxu0 0
    %1115 = vmatpush1.bf16.msra.mxu0 %v1102
    %1116 = vmatprep.subr.bf16.mxu0 0
    %1117 = vmatpush1.bf16.msra.mxu0 %v1103
    %1118 = vmatprep.subr.bf16.mxu0 0
    %1119 = vmatpush1.bf16.msra.mxu0 %v1104
    %1120 = vmatprep.subr.bf16.mxu0 0
    %1121 = vmatpush1.bf16.msra.mxu0 0
    %1122 = vmatprep.subr.bf16.mxu0 0
    %1123 = vmatpush1.bf16.msra.mxu0 0
    %1124 = vmatprep.subr.bf16.mxu0 0
    %1125 = vmatpush1.bf16.msra.mxu0 0
    %1126 = vmatprep.subr.bf16.mxu0 0
    %1127 = vmatpush1.bf16.msra.mxu0 0
    %1128 = vmatprep.subr.bf16.mxu0 0
    %1129 = vmatpush1.bf16.msra.mxu0 0
    %1130 = vmatprep.subr.bf16.mxu0 0
    %1131 = vmatpush1.bf16.msra.mxu0 0
    %1132 = vmatprep.subr.bf16.mxu0 0
    %1133 = vmatpush1.bf16.msra.mxu0 0
    %1134 = vmatprep.subr.bf16.mxu0 0
    %1135 = vmatpush1.bf16.msra.mxu0 0
    %1136 = vmatprep.subr.bf16.mxu0 0
    %1137 = vmatpush1.bf16.msra.mxu0 0
    %1138 = vmatprep.subr.bf16.mxu0 0
    %1139 = vmatpush1.bf16.msra.mxu0 0
    %1140 = vmatprep.subr.bf16.mxu0 0
    %1141 = vmatpush1.bf16.msra.mxu0 0
    %1142 = vmatprep.subr.bf16.mxu0 0
    %1143 = vmatpush1.bf16.msra.mxu0 0
    %1144 = vmatprep.mubr.bf16.mxu0 0
    %1145 = vmatmul.mubr.bf16.gmra.mrb[0].mxu0 %v1110
    %v1146 = vpop.f32.mrb[0].mxu0
    %v1147 = vadd.f32 0.0, %v1146
    %v1148 = vpop.f32.mrb[0].mxu0
    %v1149 = vpop.f32.mrb[0].mxu0
    %v1150 = vpop.f32.mrb[0].mxu0
    %1151 = vdwg.mxu0
    %v1160 = vunpack.c.l.b16 %v902
    %v1161 = vunpack.c.l.b16 %v903
    %v1162 = vunpack.c.l.b16 %v904
    %v1163 = vunpack.c.l.b16 %v905
    %v1164 = vunpack.c.l.b16 %v906
    %v1165 = vunpack.c.l.b16 %v907
    %v1166 = vunpack.c.l.b16 %v908
    %v1167 = vunpack.c.l.b16 %v909
    %v1168 = vpack.c.b16 %v1161, %v1160
    %v1169 = vpack.c.b16 %v1163, %v1162
    %v1170 = vpack.c.b16 %v1165, %v1164
    %v1171 = vpack.c.b16 %v1167, %v1166
    %v1177 = vsel %vm974, %v871, 0
    %1179 = vmatprep.subr.bf16.mxu0 0
    %1180 = vmatpush1.bf16.msra.mxu0 %v1168
    %1181 = vmatprep.subr.bf16.mxu0 0
    %1182 = vmatpush1.bf16.msra.mxu0 %v1169
    %1183 = vmatprep.subr.bf16.mxu0 0
    %1184 = vmatpush1.bf16.msra.mxu0 %v1170
    %1185 = vmatprep.subr.bf16.mxu0 0
    %1186 = vmatpush1.bf16.msra.mxu0 %v1171
    %1187 = vmatprep.subr.bf16.mxu0 0
    %1188 = vmatpush1.bf16.msra.mxu0 0
    %1189 = vmatprep.subr.bf16.mxu0 0
    %1190 = vmatpush1.bf16.msra.mxu0 0
    %1191 = vmatprep.subr.bf16.mxu0 0
    %1192 = vmatpush1.bf16.msra.mxu0 0
    %1193 = vmatprep.subr.bf16.mxu0 0
    %1194 = vmatpush1.bf16.msra.mxu0 0
    %1195 = vmatprep.subr.bf16.mxu0 0
    %1196 = vmatpush1.bf16.msra.mxu0 0
    %1197 = vmatprep.subr.bf16.mxu0 0
    %1198 = vmatpush1.bf16.msra.mxu0 0
    %1199 = vmatprep.subr.bf16.mxu0 0
    %1200 = vmatpush1.bf16.msra.mxu0 0
    %1201 = vmatprep.subr.bf16.mxu0 0
    %1202 = vmatpush1.bf16.msra.mxu0 0
    %1203 = vmatprep.subr.bf16.mxu0 0
    %1204 = vmatpush1.bf16.msra.mxu0 0
    %1205 = vmatprep.subr.bf16.mxu0 0
    %1206 = vmatpush1.bf16.msra.mxu0 0
    %1207 = vmatprep.subr.bf16.mxu0 0
    %1208 = vmatpush1.bf16.msra.mxu0 0
    %1209 = vmatprep.subr.bf16.mxu0 0
    %1210 = vmatpush1.bf16.msra.mxu0 0
    %1211 = vmatprep.mubr.bf16.mxu0 0
    %1212 = vmatmul.mubr.bf16.gmra.mrb[0].mxu0 %v1177
    %v1213 = vpop.f32.mrb[0].mxu0
    %v1214 = vadd.f32 0.0, %v1213
    %v1215 = vpop.f32.mrb[0].mxu0
    %v1216 = vpop.f32.mrb[0].mxu0
    %v1217 = vpop.f32.mrb[0].mxu0
    %1218 = vdwg.mxu0
    %v1227 = vunpack.c.l.b16 %v910
    %v1228 = vunpack.c.l.b16 %v911
    %v1229 = vunpack.c.l.b16 %v912
    %v1230 = vunpack.c.l.b16 %v913
    %v1231 = vunpack.c.l.b16 %v914
    %v1232 = vunpack.c.l.b16 %v915
    %v1233 = vunpack.c.l.b16 %v916
    %v1234 = vunpack.c.l.b16 %v917
    %v1235 = vpack.c.b16 %v1228, %v1227
    %v1236 = vpack.c.b16 %v1230, %v1229
    %v1237 = vpack.c.b16 %v1232, %v1231
    %v1238 = vpack.c.b16 %v1234, %v1233
    %v1244 = vsel %vm974, %v872, 0
    %1246 = vmatprep.subr.bf16.mxu0 0
    %1247 = vmatpush1.bf16.msra.mxu0 %v1235
    %1248 = vmatprep.subr.bf16.mxu0 0
    %1249 = vmatpush1.bf16.msra.mxu0 %v1236
    %1250 = vmatprep.subr.bf16.mxu0 0
    %1251 = vmatpush1.bf16.msra.mxu0 %v1237
    %1252 = vmatprep.subr.bf16.mxu0 0
    %1253 = vmatpush1.bf16.msra.mxu0 %v1238
    %1254 = vmatprep.subr.bf16.mxu0 0
    %1255 = vmatpush1.bf16.msra.mxu0 0
    %1256 = vmatprep.subr.bf16.mxu0 0
    %1257 = vmatpush1.bf16.msra.mxu0 0
    %1258 = vmatprep.subr.bf16.mxu0 0
    %1259 = vmatpush1.bf16.msra.mxu0 0
    %1260 = vmatprep.subr.bf16.mxu0 0
    %1261 = vmatpush1.bf16.msra.mxu0 0
    %1262 = vmatprep.subr.bf16.mxu0 0
    %1263 = vmatpush1.bf16.msra.mxu0 0
    %1264 = vmatprep.subr.bf16.mxu0 0
    %1265 = vmatpush1.bf16.msra.mxu0 0
    %1266 = vmatprep.subr.bf16.mxu0 0
    %1267 = vmatpush1.bf16.msra.mxu0 0
    %1268 = vmatprep.subr.bf16.mxu0 0
    %1269 = vmatpush1.bf16.msra.mxu0 0
    %1270 = vmatprep.subr.bf16.mxu0 0
    %1271 = vmatpush1.bf16.msra.mxu0 0
    %1272 = vmatprep.subr.bf16.mxu0 0
    %1273 = vmatpush1.bf16.msra.mxu0 0
    %1274 = vmatprep.subr.bf16.mxu0 0
    %1275 = vmatpush1.bf16.msra.mxu0 0
    %1276 = vmatprep.subr.bf16.mxu0 0
    %1277 = vmatpush1.bf16.msra.mxu0 0
    %1278 = vmatprep.mubr.bf16.mxu0 0
    %1279 = vmatmul.mubr.bf16.gmra.mrb[0].mxu0 %v1244
    %v1280 = vpop.f32.mrb[0].mxu0
    %v1281 = vadd.f32 0.0, %v1280
    %v1282 = vpop.f32.mrb[0].mxu0
    %v1283 = vpop.f32.mrb[0].mxu0
    %v1284 = vpop.f32.mrb[0].mxu0
    %1285 = vdwg.mxu0
    %v1294 = vunpack.c.l.b16 %v918
    %v1295 = vunpack.c.l.b16 %v919
    %v1296 = vunpack.c.l.b16 %v920
    %v1297 = vunpack.c.l.b16 %v921
    %v1298 = vunpack.c.l.b16 %v922
    %v1299 = vunpack.c.l.b16 %v923
    %v1300 = vunpack.c.l.b16 %v924
    %v1301 = vunpack.c.l.b16 %v925
    %v1302 = vpack.c.b16 %v1295, %v1294
    %v1303 = vpack.c.b16 %v1297, %v1296
    %v1304 = vpack.c.b16 %v1299, %v1298
    %v1305 = vpack.c.b16 %v1301, %v1300
    %v1311 = vsel %vm974, %v873, 0
    %1313 = vmatprep.subr.bf16.mxu0 0
    %1314 = vmatpush1.bf16.msra.mxu0 %v1302
    %1315 = vmatprep.subr.bf16.mxu0 0
    %1316 = vmatpush1.bf16.msra.mxu0 %v1303
    %1317 = vmatprep.subr.bf16.mxu0 0
    %1318 = vmatpush1.bf16.msra.mxu0 %v1304
    %1319 = vmatprep.subr.bf16.mxu0 0
    %1320 = vmatpush1.bf16.msra.mxu0 %v1305
    %1321 = vmatprep.subr.bf16.mxu0 0
    %1322 = vmatpush1.bf16.msra.mxu0 0
    %1323 = vmatprep.subr.bf16.mxu0 0
    %1324 = vmatpush1.bf16.msra.mxu0 0
    %1325 = vmatprep.subr.bf16.mxu0 0
    %1326 = vmatpush1.bf16.msra.mxu0 0
    %1327 = vmatprep.subr.bf16.mxu0 0
    %1328 = vmatpush1.bf16.msra.mxu0 0
    %1329 = vmatprep.subr.bf16.mxu0 0
    %1330 = vmatpush1.bf16.msra.mxu0 0
    %1331 = vmatprep.subr.bf16.mxu0 0
    %1332 = vmatpush1.bf16.msra.mxu0 0
    %1333 = vmatprep.subr.bf16.mxu0 0
    %1334 = vmatpush1.bf16.msra.mxu0 0
    %1335 = vmatprep.subr.bf16.mxu0 0
    %1336 = vmatpush1.bf16.msra.mxu0 0
    %1337 = vmatprep.subr.bf16.mxu0 0
    %1338 = vmatpush1.bf16.msra.mxu0 0
    %1339 = vmatprep.subr.bf16.mxu0 0
    %1340 = vmatpush1.bf16.msra.mxu0 0
    %1341 = vmatprep.subr.bf16.mxu0 0
    %1342 = vmatpush1.bf16.msra.mxu0 0
    %1343 = vmatprep.subr.bf16.mxu0 0
    %1344 = vmatpush1.bf16.msra.mxu0 0
    %1345 = vmatprep.mubr.bf16.mxu0 0
    %1346 = vmatmul.mubr.bf16.gmra.mrb[0].mxu0 %v1311
    %v1347 = vpop.f32.mrb[0].mxu0
    %v1348 = vadd.f32 0.0, %v1347
    %v1349 = vpop.f32.mrb[0].mxu0
    %v1350 = vpop.f32.mrb[0].mxu0
    %v1351 = vpop.f32.mrb[0].mxu0
    %1352 = vdwg.mxu0
    %v1361 = vunpack.c.l.b16 %v926
    %v1362 = vunpack.c.l.b16 %v927
    %v1363 = vunpack.c.l.b16 %v928
    %v1364 = vunpack.c.l.b16 %v929
    %v1365 = vunpack.c.l.b16 %v930
    %v1366 = vunpack.c.l.b16 %v931
    %v1367 = vunpack.c.l.b16 %v932
    %v1368 = vunpack.c.l.b16 %v933
    %v1369 = vpack.c.b16 %v1362, %v1361
    %v1370 = vpack.c.b16 %v1364, %v1363
    %v1371 = vpack.c.b16 %v1366, %v1365
    %v1372 = vpack.c.b16 %v1368, %v1367
    %v1378 = vsel %vm974, %v874, 0
    %1380 = vmatprep.subr.bf16.mxu0 0
    %1381 = vmatpush1.bf16.msra.mxu0 %v1369
    %1382 = vmatprep.subr.bf16.mxu0 0
    %1383 = vmatpush1.bf16.msra.mxu0 %v1370
    %1384 = vmatprep.subr.bf16.mxu0 0
    %1385 = vmatpush1.bf16.msra.mxu0 %v1371
    %1386 = vmatprep.subr.bf16.mxu0 0
    %1387 = vmatpush1.bf16.msra.mxu0 %v1372
    %1388 = vmatprep.subr.bf16.mxu0 0
    %1389 = vmatpush1.bf16.msra.mxu0 0
    %1390 = vmatprep.subr.bf16.mxu0 0
    %1391 = vmatpush1.bf16.msra.mxu0 0
    %1392 = vmatprep.subr.bf16.mxu0 0
    %1393 = vmatpush1.bf16.msra.mxu0 0
    %1394 = vmatprep.subr.bf16.mxu0 0
    %1395 = vmatpush1.bf16.msra.mxu0 0
    %1396 = vmatprep.subr.bf16.mxu0 0
    %1397 = vmatpush1.bf16.msra.mxu0 0
    %1398 = vmatprep.subr.bf16.mxu0 0
    %1399 = vmatpush1.bf16.msra.mxu0 0
    %1400 = vmatprep.subr.bf16.mxu0 0
    %1401 = vmatpush1.bf16.msra.mxu0 0
    %1402 = vmatprep.subr.bf16.mxu0 0
    %1403 = vmatpush1.bf16.msra.mxu0 0
    %1404 = vmatprep.subr.bf16.mxu0 0
    %1405 = vmatpush1.bf16.msra.mxu0 0
    %1406 = vmatprep.subr.bf16.mxu0 0
    %1407 = vmatpush1.bf16.msra.mxu0 0
    %1408 = vmatprep.subr.bf16.mxu0 0
    %1409 = vmatpush1.bf16.msra.mxu0 0
    %1410 = vmatprep.subr.bf16.mxu0 0
    %1411 = vmatpush1.bf16.msra.mxu0 0
    %1412 = vmatprep.mubr.bf16.mxu0 0
    %1413 = vmatmul.mubr.bf16.gmra.mrb[0].mxu0 %v1378
    %v1414 = vpop.f32.mrb[0].mxu0
    %v1415 = vadd.f32 0.0, %v1414
    %v1416 = vpop.f32.mrb[0].mxu0
    %v1417 = vpop.f32.mrb[0].mxu0
    %v1418 = vpop.f32.mrb[0].mxu0
    %1419 = vdwg.mxu0
    %v1428 = vunpack.c.l.b16 %v934
    %v1429 = vunpack.c.l.b16 %v935
    %v1430 = vunpack.c.l.b16 %v936
    %v1431 = vunpack.c.l.b16 %v937
    %v1432 = vunpack.c.l.b16 %v938
    %v1433 = vunpack.c.l.b16 %v939
    %v1434 = vunpack.c.l.b16 %v940
    %v1435 = vunpack.c.l.b16 %v941
    %v1436 = vpack.c.b16 %v1429, %v1428
    %v1437 = vpack.c.b16 %v1431, %v1430
    %v1438 = vpack.c.b16 %v1433, %v1432
    %v1439 = vpack.c.b16 %v1435, %v1434
    %v1445 = vsel %vm974, %v875, 0
    %1447 = vmatprep.subr.bf16.mxu0 0
    %1448 = vmatpush1.bf16.msra.mxu0 %v1436
    %1449 = vmatprep.subr.bf16.mxu0 0
    %1450 = vmatpush1.bf16.msra.mxu0 %v1437
    %1451 = vmatprep.subr.bf16.mxu0 0
    %1452 = vmatpush1.bf16.msra.mxu0 %v1438
    %1453 = vmatprep.subr.bf16.mxu0 0
    %1454 = vmatpush1.bf16.msra.mxu0 %v1439
    %1455 = vmatprep.subr.bf16.mxu0 0
    %1456 = vmatpush1.bf16.msra.mxu0 0
    %1457 = vmatprep.subr.bf16.mxu0 0
    %1458 = vmatpush1.bf16.msra.mxu0 0
    %1459 = vmatprep.subr.bf16.mxu0 0
    %1460 = vmatpush1.bf16.msra.mxu0 0
    %1461 = vmatprep.subr.bf16.mxu0 0
    %1462 = vmatpush1.bf16.msra.mxu0 0
    %1463 = vmatprep.subr.bf16.mxu0 0
    %1464 = vmatpush1.bf16.msra.mxu0 0
    %1465 = vmatprep.subr.bf16.mxu0 0
    %1466 = vmatpush1.bf16.msra.mxu0 0
    %1467 = vmatprep.subr.bf16.mxu0 0
    %1468 = vmatpush1.bf16.msra.mxu0 0
    %1469 = vmatprep.subr.bf16.mxu0 0
    %1470 = vmatpush1.bf16.msra.mxu0 0
    %1471 = vmatprep.subr.bf16.mxu0 0
    %1472 = vmatpush1.bf16.msra.mxu0 0
    %1473 = vmatprep.subr.bf16.mxu0 0
    %1474 = vmatpush1.bf16.msra.mxu0 0
    %1475 = vmatprep.subr.bf16.mxu0 0
    %1476 = vmatpush1.bf16.msra.mxu0 0
    %1477 = vmatprep.subr.bf16.mxu0 0
    %1478 = vmatpush1.bf16.msra.mxu0 0
    %1479 = vmatprep.mubr.bf16.mxu0 0
    %1480 = vmatmul.mubr.bf16.gmra.mrb[0].mxu0 %v1445
    %v1481 = vpop.f32.mrb[0].mxu0
    %v1482 = vadd.f32 0.0, %v1481
    %v1483 = vpop.f32.mrb[0].mxu0
    %v1484 = vpop.f32.mrb[0].mxu0
    %v1485 = vpop.f32.mrb[0].mxu0
    %1486 = vdwg.mxu0
    %v1495 = vunpack.c.l.b16 %v942
    %v1496 = vunpack.c.l.b16 %v943
    %v1497 = vunpack.c.l.b16 %v944
    %v1498 = vunpack.c.l.b16 %v945
    %v1499 = vunpack.c.l.b16 %v946
    %v1500 = vunpack.c.l.b16 %v947
    %v1501 = vunpack.c.l.b16 %v948
    %v1502 = vunpack.c.l.b16 %v949
    %v1503 = vpack.c.b16 %v1496, %v1495
    %v1504 = vpack.c.b16 %v1498, %v1497
    %v1505 = vpack.c.b16 %v1500, %v1499
    %v1506 = vpack.c.b16 %v1502, %v1501
    %v1512 = vsel %vm974, %v876, 0
    %1514 = vmatprep.subr.bf16.mxu0 0
    %1515 = vmatpush1.bf16.msra.mxu0 %v1503
    %1516 = vmatprep.subr.bf16.mxu0 0
    %1517 = vmatpush1.bf16.msra.mxu0 %v1504
    %1518 = vmatprep.subr.bf16.mxu0 0
    %1519 = vmatpush1.bf16.msra.mxu0 %v1505
    %1520 = vmatprep.subr.bf16.mxu0 0
    %1521 = vmatpush1.bf16.msra.mxu0 %v1506
    %1522 = vmatprep.subr.bf16.mxu0 0
    %1523 = vmatpush1.bf16.msra.mxu0 0
    %1524 = vmatprep.subr.bf16.mxu0 0
    %1525 = vmatpush1.bf16.msra.mxu0 0
    %1526 = vmatprep.subr.bf16.mxu0 0
    %1527 = vmatpush1.bf16.msra.mxu0 0
    %1528 = vmatprep.subr.bf16.mxu0 0
    %1529 = vmatpush1.bf16.msra.mxu0 0
    %1530 = vmatprep.subr.bf16.mxu0 0
    %1531 = vmatpush1.bf16.msra.mxu0 0
    %1532 = vmatprep.subr.bf16.mxu0 0
    %1533 = vmatpush1.bf16.msra.mxu0 0
    %1534 = vmatprep.subr.bf16.mxu0 0
    %1535 = vmatpush1.bf16.msra.mxu0 0
    %1536 = vmatprep.subr.bf16.mxu0 0
    %1537 = vmatpush1.bf16.msra.mxu0 0
    %1538 = vmatprep.subr.bf16.mxu0 0
    %1539 = vmatpush1.bf16.msra.mxu0 0
    %1540 = vmatprep.subr.bf16.mxu0 0
    %1541 = vmatpush1.bf16.msra.mxu0 0
    %1542 = vmatprep.subr.bf16.mxu0 0
    %1543 = vmatpush1.bf16.msra.mxu0 0
    %1544 = vmatprep.subr.bf16.mxu0 0
    %1545 = vmatpush1.bf16.msra.mxu0 0
    %1546 = vmatprep.mubr.bf16.mxu0 0
    %1547 = vmatmul.mubr.bf16.gmra.mrb[0].mxu0 %v1512
    %v1548 = vpop.f32.mrb[0].mxu0
    %v1549 = vadd.f32 0.0, %v1548
    %v1550 = vpop.f32.mrb[0].mxu0
    %v1551 = vpop.f32.mrb[0].mxu0
    %v1552 = vpop.f32.mrb[0].mxu0
    %1553 = vdwg.mxu0
    %v1554 = vadd.f32 %v1013, %v1080
    %v1555 = vadd.f32 %v1554, %v1147
    %v1556 = vadd.f32 %v1555, %v1214
    %v1557 = vadd.f32 %v1556, %v1281
    %v1558 = vadd.f32 %v1557, %v1348
    %v1559 = vadd.f32 %v1558, %v1415
    %v1560 = vadd.f32 %v1559, %v1482
    %v1561 = vadd.f32 %v1560, %v1549
    %v1562 = vlaneseq
    %v1563 = vshrl.u32 %v1562, 7
    %v1564 = vsub.s32 1, %v1563
    %v1565 = vrot.slane %v16, %v1564
    %v1566 = vadd.f32 %v1561, %v1565
    %v1567 = vmax.f32 %v1566, 0.0
    %s1568 = scalar_lea.vmem %s1, 432
    %v1569 = vld [vmem:[%s1568] sm:$0xf]
    %v1570 = vld [vmem:[%s1568 + $0x4] sm:$0xf]
    %v1571 = vld [vmem:[%s1568 + $0x8] sm:$0xf]
    %v1572 = vld [vmem:[%s1568 + $0xc] sm:$0xf]
    %v1573 = vld [vmem:[%s1568 + $0x10] sm:$0xf]
    %v1574 = vld [vmem:[%s1568 + $0x14] sm:$0xf]
    %v1575 = vld [vmem:[%s1568 + $0x18] sm:$0xf]
    %v1576 = vld [vmem:[%s1568 + $0x1c] sm:$0xf]
    %v1577 = vpack.c.bf16 %v1567, %v1567
    %v1578 = vlaneseq
    %v1579 = vshrl.u32 %v1578, 7
    %v1580 = vsub.s32 2, %v1579
    %v1581 = vrot.slane %v16, %v1580
    %v1590 = vunpack.c.l.b16 %v1569
    %v1591 = vunpack.c.l.b16 %v1570
    %v1592 = vunpack.c.l.b16 %v1571
    %v1593 = vunpack.c.l.b16 %v1572
    %v1594 = vunpack.c.l.b16 %v1573
    %v1595 = vunpack.c.l.b16 %v1574
    %v1596 = vunpack.c.l.b16 %v1575
    %v1597 = vunpack.c.l.b16 %v1576
    %v1598 = vpack.c.b16 %v1591, %v1590
    %v1599 = vpack.c.b16 %v1593, %v1592
    %v1600 = vpack.c.b16 %v1595, %v1594
    %v1601 = vpack.c.b16 %v1597, %v1596
    %v1607 = vsel %vm974, %v1577, 0
    %1609 = vmatprep.subr.bf16.mxu0 0
    %1610 = vmatpush1.bf16.msra.mxu0 %v1598
    %1611 = vmatprep.subr.bf16.mxu0 0
    %1612 = vmatpush1.bf16.msra.mxu0 %v1599
    %1613 = vmatprep.subr.bf16.mxu0 0
    %1614 = vmatpush1.bf16.msra.mxu0 %v1600
    %1615 = vmatprep.subr.bf16.mxu0 0
    %1616 = vmatpush1.bf16.msra.mxu0 %v1601
    %1617 = vmatprep.subr.bf16.mxu0 0
    %1618 = vmatpush1.bf16.msra.mxu0 0
    %1619 = vmatprep.subr.bf16.mxu0 0
    %1620 = vmatpush1.bf16.msra.mxu0 0
    %1621 = vmatprep.subr.bf16.mxu0 0
    %1622 = vmatpush1.bf16.msra.mxu0 0
    %1623 = vmatprep.subr.bf16.mxu0 0
    %1624 = vmatpush1.bf16.msra.mxu0 0
    %1625 = vmatprep.subr.bf16.mxu0 0
    %1626 = vmatpush1.bf16.msra.mxu0 0
    %1627 = vmatprep.subr.bf16.mxu0 0
    %1628 = vmatpush1.bf16.msra.mxu0 0
    %1629 = vmatprep.subr.bf16.mxu0 0
    %1630 = vmatpush1.bf16.msra.mxu0 0
    %1631 = vmatprep.subr.bf16.mxu0 0
    %1632 = vmatpush1.bf16.msra.mxu0 0
    %1633 = vmatprep.subr.bf16.mxu0 0
    %1634 = vmatpush1.bf16.msra.mxu0 0
    %1635 = vmatprep.subr.bf16.mxu0 0
    %1636 = vmatpush1.bf16.msra.mxu0 0
    %1637 = vmatprep.subr.bf16.mxu0 0
    %1638 = vmatpush1.bf16.msra.mxu0 0
    %1639 = vmatprep.subr.bf16.mxu0 0
    %1640 = vmatpush1.bf16.msra.mxu0 0
    %1641 = vmatprep.mubr.bf16.mxu0 0
    %1642 = vmatmul.mubr.bf16.gmra.mrb[0].mxu0 %v1607
    %v1643 = vpop.f32.mrb[0].mxu0
    %v1644 = vadd.f32 %v1581, %v1643
    %v1645 = vpop.f32.mrb[0].mxu0
    %v1646 = vpop.f32.mrb[0].mxu0
    %v1647 = vpop.f32.mrb[0].mxu0
    %1648 = vdwg.mxu0
    %vm1649 = vcmask 517120
    %1650 = vst.msk [vmem:[#allocation2] sm:$0x3] %vm1649, %v1644
    // Predicated region
    $region14: #{cnn1d_forward.1} parent=1 // pred_check
      _
    $region15: #{cnn1d_forward.1} parent=1 // pred_check_branch
      %1652 = sbr.rel (0) target = $region17
    $region16: #{cnn1d_forward.1} parent=1 // pred_region
      %s1654 = ssub.s32 32, 32
      %1655 = vsyncadd [#allocation3], %s1654
      %s1657 = sshll.u32 [#allocation2], 4
      %s1658 = int_to_ptr.vmem [resolvable:$true] %s1657
      %1660 = dma.vmem_to_hbm [thread:$0]  %s1658, 32, %s3, [#allocation3]
    $region17: #{cnn1d_forward.1} parent=1 // pred_fallthru
      _
    // Predicated region
    $region18: #{cnn1d_forward.1} parent=1 // pred_check
      _
    $region19: #{cnn1d_forward.1} parent=1 // pred_check_branch
      %1662 = sbr.rel (0) target = $region21
    $region20: #{cnn1d_forward.1} parent=1 // pred_region
      %1663 = dma.done [#allocation3], 32
    $region21: #{cnn1d_forward.1} parent=1 // pred_fallthru
      _
    %1664 = vsyncpa [#allocation3], 1

</llo_original>
